<compile_context>
chip_gen: v6e
topology: v6e:2x2x1
jax: 0.10.0
libtpu: 0.0.40
codegen_flags: <defaults>
</compile_context>

<pallas_src>
import functools

import jax
import jax.numpy as jnp
from jax.experimental import pallas as pl
from jax.experimental.pallas import tpu as pltpu


# -----------------------------------------------------------------------------
# Pallas kernel: full EncoderLayer forward for one block of batch elements.
# -----------------------------------------------------------------------------
def encoder_layer_kernel(
    x_ref,     # (Bt, S, D)   f32
    wq_ref,    # (D, H*A)     bf16   fused query weights (head-major columns)
    wk_ref,    # (D, H*A)     bf16   fused key weights
    wv_ref,    # (D, H*D)     bf16   fused value weights
    wo_ref,    # (H*D, D)     bf16   head-mix fc, rows reordered head-major
    w1_ref,    # (D, D)       bf16   fc1 weight (input-major)
    b1_ref,    # (1, D)       f32
    w2_ref,    # (D, D)       bf16   fc2 weight (input-major)
    b2_ref,    # (1, D)       f32
    g1_ref,    # (1, D)       f32    norm1 gamma
    be1_ref,   # (1, D)       f32    norm1 beta
    g2_ref,    # (1, D)       f32    norm2 gamma
    be2_ref,   # (1, D)       f32    norm2 beta
    o_ref,     # (Bt, S, D)
    *,
    n_heads: int,
):
    bt, seq, d = x_ref.shape
    d_attn = wq_ref.shape[1] // n_heads
    rows = bt * seq
    scale = 1.0 / (float(d_attn) ** 0.5)

    # Packed (Bt*S, D) slab: keep an f32 copy for residual / element-wise math
    # (exact on v5e's VPU) and a bf16 copy for the MXU operands.
    x = x_ref[...].reshape(rows, d).astype(jnp.float32)
    xb = x.astype(jnp.bfloat16)

    # ---- fused multi-head projections: one wide matmul each ------------------
    q_all = jnp.dot(xb, wq_ref[...], preferred_element_type=jnp.float32)  # (R, H*A)
    k_all = jnp.dot(xb, wk_ref[...], preferred_element_type=jnp.float32)  # (R, H*A)
    v_all = jnp.dot(xb, wv_ref[...], preferred_element_type=jnp.float32)  # (R, H*D)

    q3 = q_all.reshape(bt, seq, n_heads * d_attn).astype(jnp.bfloat16)
    k3 = k_all.reshape(bt, seq, n_heads * d_attn).astype(jnp.bfloat16)
    v3 = v_all.reshape(bt, seq, n_heads * d).astype(jnp.bfloat16)

    # Per-head scaled-dot-product attention.  Projections / head-mix are already
    # fused; this small static loop only carries the (Bt,S,S) score tile per head.
    # TODO(synk): for S beyond ~1-2K, switch to a KV-tiled online softmax
    # (flash style) to bound live VMEM — matters most on v7x (64 MiB VMEM).
    head_ctx = []
    for h in range(n_heads):
        qh = q3[:, :, h * d_attn:(h + 1) * d_attn]        # (Bt, S, A)
        kh = k3[:, :, h * d_attn:(h + 1) * d_attn]        # (Bt, S, A)
        vh = v3[:, :, h * d:(h + 1) * d]                  # (Bt, S, D)
        s = jnp.einsum("bqa,bka->bqk", qh, kh,
                       preferred_element_type=jnp.float32) * scale
        s = s - jnp.max(s, axis=-1, keepdims=True)
        p = jnp.exp(s)
        p = p * pl.reciprocal(jnp.sum(p, axis=-1, keepdims=True), approx=True)
        head_ctx.append(jnp.einsum("bqk,bkd->bqd", p.astype(jnp.bfloat16), vh,
                                   preferred_element_type=jnp.float32))

    # Head-major concat + single (R, H*D) @ (H*D, D) head-mix matmul.
    ctx = jnp.concatenate(head_ctx, axis=-1).reshape(rows, n_heads * d)
    a_mix = jnp.dot(ctx.astype(jnp.bfloat16), wo_ref[...],
                    preferred_element_type=jnp.float32)               # (R, D)

    def layernorm(y, g, b):   # biased variance, eps=1e-5 (PyTorch LayerNorm)
        mu = jnp.mean(y, axis=-1, keepdims=True)
        var = jnp.mean((y - mu) ** 2, axis=-1, keepdims=True)
        return (y - mu) * jax.lax.rsqrt(var + 1e-5) * g + b

    # ---- residual + LayerNorm 1 ----------------------------------------------
    x1 = layernorm(x + a_mix, g1_ref[...], be1_ref[...])

    # ---- feed-forward: fc1(elu(fc2(x1))) --------------------------------------
    h2 = jnp.dot(x1.astype(jnp.bfloat16), w2_ref[...],
                 preferred_element_type=jnp.float32) + b2_ref[...]
    # ELU (alpha=1); clamp before exp so the discarded branch never overflows.
    h2 = jnp.where(h2 > 0, h2, jnp.exp(jnp.minimum(h2, 0.0)) - 1.0)
    ff = jnp.dot(h2.astype(jnp.bfloat16), w1_ref[...],
                 preferred_element_type=jnp.float32) + b1_ref[...]

    # ---- residual + LayerNorm 2 ----------------------------------------------
    x2 = layernorm(x1 + ff, g2_ref[...], be2_ref[...])

    o_ref[...] = x2.reshape(bt, seq, d).astype(o_ref.dtype)


# -----------------------------------------------------------------------------
# Host wrapper
# -----------------------------------------------------------------------------
def _pick_block_b(batch, seq, target_rows=128):
    """Smallest divisor of `batch` whose packed row count fills the MXU M dim."""
    for bt in range(1, batch + 1):
        if batch % bt == 0 and bt * seq >= target_rows:
            return bt
    return batch


def encoder_layer(x, params, *, block_b=None):
    B, S, D = x.shape
    H = int(params["n_heads"])
    if block_b is None:
        block_b = _pick_block_b(B, S)
    assert B % block_b == 0
    grid = (B // block_b,)   # For realistic batch sizes this yields several
                             # parallel blocks so both v7x TensorCores get work.

    weights = (
        params["wq_all"], params["wk_all"], params["wv_all"], params["wo_cat"],
        params["w1_mm"], params["b1"], params["w2_mm"], params["b2"],
        params["g1"], params["be1"], params["g2"], params["be2"],
    )

    def const_spec(arr):
        nd = arr.ndim
        # Grid-invariant operand (same block every step).  At production D these
        # could additionally be single-buffered to halve VMEM footprint on v7x.
        return pl.BlockSpec(arr.shape, lambda i, _nd=nd: (0,) * _nd)

    return pl.pallas_call(
        functools.partial(encoder_layer_kernel, n_heads=H),
        out_shape=jax.ShapeDtypeStruct((B, S, D), x.dtype),
        grid=grid,
        in_specs=[pl.BlockSpec((block_b, S, D), lambda i: (i, 0, 0))]
                 + [const_spec(w) for w in weights],
        # D(=32) < 128 leaves the output stores lane-masked; for small-D
        # production shapes pack S*D into the lane dim instead (layout-only).
        out_specs=pl.BlockSpec((block_b, S, D), lambda i: (i, 0, 0)),
        compiler_params=pltpu.CompilerParams(
            dimension_semantics=("parallel",),
            # Explicit scoped-VMEM budget; tiny here, tune upward for large D.
            vmem_limit_bytes=32 * 1024 * 1024,
        ),
    )(x, *weights)


# -----------------------------------------------------------------------------
# Pure-JAX reference (mirrors the PyTorch forward literally, f32 throughout)
# -----------------------------------------------------------------------------
def encoder_layer_ref(x, params):
    wq, wk, wv = params["wq"], params["wk"], params["wv"]
    wo = params["wo_flat"]                      # (H*D, D), interleaved d*H + h
    H, D, A = wq.shape
    B, S, _ = x.shape

    heads = []
    for h in range(H):
        q = x @ wq[h]
        k = x @ wk[h]
        v = x @ wv[h]
        s = (q @ jnp.swapaxes(k, -1, -2)) / jnp.sqrt(jnp.float32(A))
        heads.append(jax.nn.softmax(s, axis=-1) @ v)
    a = jnp.stack(heads, axis=-1)               # (B,S,D,H) == torch.stack(dim=-1)
    a = a.reshape(B, S, D * H)                  # flatten(start_dim=2): d*H + h
    a = a @ wo

    def layernorm(y, g, b):
        mu = jnp.mean(y, axis=-1, keepdims=True)
        var = jnp.mean((y - mu) ** 2, axis=-1, keepdims=True)
        return (y - mu) * jax.lax.rsqrt(var + 1e-5) * g + b

    x1 = layernorm(x + a, params["g1"], params["be1"])
    ff = jax.nn.elu(x1 @ params["w2"] + params["b2"]) @ params["w1"] + params["b1"]
    return layernorm(x1 + ff, params["g2"], params["be2"])


# -----------------------------------------------------------------------------
# Deterministic parameter init + smoke test
# -----------------------------------------------------------------------------
def init_params(key, dim_val, dim_attn, n_heads):
    ks = jax.random.split(key, 8)
    sc = 0.1

    def rt(w):   # round-trip through bf16 so kernel (bf16 weights) and the
        return w.astype(jnp.bfloat16).astype(jnp.float32)   # f32 reference agree

    wq = rt(sc * jax.random.normal(ks[0], (n_heads, dim_val, dim_attn), jnp.float32))
    wk = rt(sc * jax.random.normal(ks[1], (n_heads, dim_val, dim_attn), jnp.float32))
    wv = rt(sc * jax.random.normal(ks[2], (n_heads, dim_val, dim_val), jnp.float32))
    # Head-mixing fc: input dim n_heads*dim_val with PyTorch's d*H + h interleave.
    wo_flat = rt(sc * jax.random.normal(ks[3], (n_heads * dim_val, dim_val), jnp.float32))
    w1 = rt(sc * jax.random.normal(ks[4], (dim_val, dim_val), jnp.float32))
    b1 = sc * jax.random.normal(ks[5], (1, dim_val), jnp.float32)
    w2 = rt(sc * jax.random.normal(ks[6], (dim_val, dim_val), jnp.float32))
    b2 = sc * jax.random.normal(ks[7], (1, dim_val), jnp.float32)
    g1 = jnp.ones((1, dim_val), jnp.float32); be1 = jnp.zeros((1, dim_val), jnp.float32)
    g2 = jnp.ones((1, dim_val), jnp.float32); be2 = jnp.zeros((1, dim_val), jnp.float32)

    # ---- kernel-layout (fused, head-major, bf16) copies -----------------------
    wq_all = jnp.transpose(wq, (1, 0, 2)).reshape(dim_val, n_heads * dim_attn)
    wk_all = jnp.transpose(wk, (1, 0, 2)).reshape(dim_val, n_heads * dim_attn)
    wv_all = jnp.transpose(wv, (1, 0, 2)).reshape(dim_val, n_heads * dim_val)
    # De-interleave wo rows from d*H + h to head-major h*D + d.
    wo_cat = wo_flat.reshape(dim_val, n_heads, dim_val).transpose(1, 0, 2)
    wo_cat = wo_cat.reshape(n_heads * dim_val, dim_val)

    bf = lambda w: w.astype(jnp.bfloat16)
    return dict(
        n_heads=n_heads,
        # PyTorch-layout f32 weights (reference)
        wq=wq, wk=wk, wv=wv, wo_flat=wo_flat, w1=w1, w2=w2,
        # kernel-layout bf16 weights
        wq_all=bf(wq_all), wk_all=bf(wk_all), wv_all=bf(wv_all), wo_cat=bf(wo_cat),
        w1_mm=bf(w1), w2_mm=bf(w2),
        # f32 vectors shared by kernel & reference
        b1=b1, b2=b2, g1=g1, be1=be1, g2=g2, be2=be2,
    )


if __name__ == "__main__":
    B, S, dim_val, dim_attn, n_heads = 2, 8, 32, 16, 2

    key = jax.random.PRNGKey(0)
    k_x, k_p = jax.random.split(key)
    x = jax.random.normal(k_x, (B, S, dim_val), jnp.float32)
    params = init_params(k_p, dim_val, dim_attn, n_heads)

    out = jax.block_until_ready(encoder_layer(x, params))
    ref = jax.block_until_ready(encoder_layer_ref(x, params))

    assert out.shape == (B, S, dim_val)
    # bf16 MXU operands (f32 accumulation) => looser tolerance than a pure-f32 run.
    assert jnp.allclose(out, ref, atol=5e-2, rtol=5e-2), (
        f"max abs err {jnp.max(jnp.abs(out - ref))}")
    print("KERNEL_OK")
</pallas_src>

<mosaic_0001>
module attributes {stable_mosaic.version = 11 : i64} {
  func.func @encoder_layer_kernel(%arg0: i32, %arg1: memref<2x8x32xf32, #tpu.memory_space<vmem>>, %arg2: memref<32x32xbf16, #tpu.memory_space<vmem>>, %arg3: memref<32x32xbf16, #tpu.memory_space<vmem>>, %arg4: memref<32x64xbf16, #tpu.memory_space<vmem>>, %arg5: memref<64x32xbf16, #tpu.memory_space<vmem>>, %arg6: memref<32x32xbf16, #tpu.memory_space<vmem>>, %arg7: memref<1x32xf32, #tpu.memory_space<vmem>>, %arg8: memref<32x32xbf16, #tpu.memory_space<vmem>>, %arg9: memref<1x32xf32, #tpu.memory_space<vmem>>, %arg10: memref<1x32xf32, #tpu.memory_space<vmem>>, %arg11: memref<1x32xf32, #tpu.memory_space<vmem>>, %arg12: memref<1x32xf32, #tpu.memory_space<vmem>>, %arg13: memref<1x32xf32, #tpu.memory_space<vmem>>, %arg14: memref<2x8x32xf32, #tpu.memory_space<vmem>>) attributes {dimension_semantics = [#tpu.dimension_semantics<parallel>], iteration_bounds = array<i64: 1>, scalar_prefetch = 0 : i64, scratch_operands = 0 : i64, tpu.core_type = #tpu.core_type<tc>, window_params = [{transform_indices = @transform_0, window_bounds = array<i64: 2, 8, 32>}, {pipeline_mode = #tpu.pipeline_mode<synchronous>, transform_indices = @transform_1, window_bounds = array<i64: 32, 32>}, {pipeline_mode = #tpu.pipeline_mode<synchronous>, transform_indices = @transform_2, window_bounds = array<i64: 32, 32>}, {pipeline_mode = #tpu.pipeline_mode<synchronous>, transform_indices = @transform_3, window_bounds = array<i64: 32, 64>}, {pipeline_mode = #tpu.pipeline_mode<synchronous>, transform_indices = @transform_4, window_bounds = array<i64: 64, 32>}, {pipeline_mode = #tpu.pipeline_mode<synchronous>, transform_indices = @transform_5, window_bounds = array<i64: 32, 32>}, {pipeline_mode = #tpu.pipeline_mode<synchronous>, transform_indices = @transform_6, window_bounds = array<i64: 1, 32>}, {pipeline_mode = #tpu.pipeline_mode<synchronous>, transform_indices = @transform_7, window_bounds = array<i64: 32, 32>}, {pipeline_mode = #tpu.pipeline_mode<synchronous>, transform_indices = @transform_8, window_bounds = array<i64: 1, 32>}, {pipeline_mode = #tpu.pipeline_mode<synchronous>, transform_indices = @transform_9, window_bounds = array<i64: 1, 32>}, {pipeline_mode = #tpu.pipeline_mode<synchronous>, transform_indices = @transform_10, window_bounds = array<i64: 1, 32>}, {pipeline_mode = #tpu.pipeline_mode<synchronous>, transform_indices = @transform_11, window_bounds = array<i64: 1, 32>}, {pipeline_mode = #tpu.pipeline_mode<synchronous>, transform_indices = @transform_12, window_bounds = array<i64: 1, 32>}, {transform_indices = @transform_13, window_bounds = array<i64: 2, 8, 32>}]} {
    %c0 = arith.constant 0 : index
    %c0_0 = arith.constant 0 : index
    %c0_1 = arith.constant 0 : index
    %0 = vector.load %arg1[%c0, %c0_0, %c0_1] : memref<2x8x32xf32, #tpu.memory_space<vmem>>, vector<2x8x32xf32>
    %1 = vector.shape_cast %0 : vector<2x8x32xf32> to vector<16x32xf32>
    %2 = arith.truncf %1 : vector<16x32xf32> to vector<16x32xbf16>
    %c0_2 = arith.constant 0 : index
    %c0_3 = arith.constant 0 : index
    %3 = vector.load %arg2[%c0_2, %c0_3] : memref<32x32xbf16, #tpu.memory_space<vmem>>, vector<32x32xbf16>
    %cst = arith.constant dense<0.000000e+00> : vector<16x32xf32>
    %4 = tpu.matmul %2, %3, %cst {dimension_numbers = #tpu.dot_dimension_numbers<[1], [0], [0], [1], [0, 0, 1, 1], [], []>} : vector<16x32xbf16>, vector<32x32xbf16>, vector<16x32xf32> -> vector<16x32xf32>
    %c0_4 = arith.constant 0 : index
    %c0_5 = arith.constant 0 : index
    %5 = vector.load %arg3[%c0_4, %c0_5] : memref<32x32xbf16, #tpu.memory_space<vmem>>, vector<32x32xbf16>
    %cst_6 = arith.constant dense<0.000000e+00> : vector<16x32xf32>
    %6 = tpu.matmul %2, %5, %cst_6 {dimension_numbers = #tpu.dot_dimension_numbers<[1], [0], [0], [1], [0, 0, 1, 1], [], []>} : vector<16x32xbf16>, vector<32x32xbf16>, vector<16x32xf32> -> vector<16x32xf32>
    %c0_7 = arith.constant 0 : index
    %c0_8 = arith.constant 0 : index
    %7 = vector.load %arg4[%c0_7, %c0_8] : memref<32x64xbf16, #tpu.memory_space<vmem>>, vector<32x64xbf16>
    %cst_9 = arith.constant dense<0.000000e+00> : vector<16x64xf32>
    %8 = tpu.matmul %2, %7, %cst_9 {dimension_numbers = #tpu.dot_dimension_numbers<[1], [0], [0], [1], [0, 0, 1, 1], [], []>} : vector<16x32xbf16>, vector<32x64xbf16>, vector<16x64xf32> -> vector<16x64xf32>
    %9 = vector.shape_cast %4 : vector<16x32xf32> to vector<2x8x32xf32>
    %10 = arith.truncf %9 : vector<2x8x32xf32> to vector<2x8x32xbf16>
    %11 = vector.shape_cast %6 : vector<16x32xf32> to vector<2x8x32xf32>
    %12 = arith.truncf %11 : vector<2x8x32xf32> to vector<2x8x32xbf16>
    %13 = vector.shape_cast %8 : vector<16x64xf32> to vector<2x8x64xf32>
    %14 = arith.truncf %13 : vector<2x8x64xf32> to vector<2x8x64xbf16>
    %15 = vector.extract_strided_slice %10 {offsets = [0, 0, 0], sizes = [2, 8, 16], strides = [1, 1, 1]} : vector<2x8x32xbf16> to vector<2x8x16xbf16>
    %16 = vector.extract_strided_slice %12 {offsets = [0, 0, 0], sizes = [2, 8, 16], strides = [1, 1, 1]} : vector<2x8x32xbf16> to vector<2x8x16xbf16>
    %17 = vector.extract_strided_slice %14 {offsets = [0, 0, 0], sizes = [2, 8, 32], strides = [1, 1, 1]} : vector<2x8x64xbf16> to vector<2x8x32xbf16>
    "tpu.trace_start"() <{level = 10 : i32, message = "bqa,bka->bqk"}> : () -> ()
    %cst_10 = arith.constant dense<0.000000e+00> : vector<2x8x8xf32>
    %18 = tpu.matmul %15, %16, %cst_10 {dimension_numbers = #tpu.dot_dimension_numbers<[2], [2], [1], [1], [0, 0, 0, 1, 1, 1], [0], [0]>} : vector<2x8x16xbf16>, vector<2x8x16xbf16>, vector<2x8x8xf32> -> vector<2x8x8xf32>
    "tpu.trace_stop"() : () -> ()
    %cst_11 = arith.constant 2.500000e-01 : f32
    %19 = vector.broadcast %cst_11 : f32 to vector<2x8x8xf32>
    %20 = arith.mulf %18, %19 : vector<2x8x8xf32>
    %cst_12 = arith.constant dense<0xFF800000> : vector<2x8xf32>
    %21 = vector.multi_reduction <maximumf>, %20, %cst_12 [2] : vector<2x8x8xf32> to vector<2x8xf32>
    %22 = vector.shape_cast %21 : vector<2x8xf32> to vector<2x8x1xf32>
    %23 = vector.broadcast %22 : vector<2x8x1xf32> to vector<2x8x8xf32>
    %24 = arith.subf %20, %23 : vector<2x8x8xf32>
    %25 = math.exp %24 : vector<2x8x8xf32>
    %cst_13 = arith.constant dense<0.000000e+00> : vector<2x8xf32>
    %26 = vector.multi_reduction <add>, %25, %cst_13 [2] : vector<2x8x8xf32> to vector<2x8xf32>
    %27 = vector.shape_cast %26 : vector<2x8xf32> to vector<2x8x1xf32>
    %28 = tpu.reciprocal %27 {approx = true} : vector<2x8x1xf32> -> vector<2x8x1xf32>
    %29 = vector.broadcast %28 : vector<2x8x1xf32> to vector<2x8x8xf32>
    %30 = arith.mulf %25, %29 : vector<2x8x8xf32>
    %31 = arith.truncf %30 : vector<2x8x8xf32> to vector<2x8x8xbf16>
    "tpu.trace_start"() <{level = 10 : i32, message = "bqk,bkd->bqd"}> : () -> ()
    %cst_14 = arith.constant dense<0.000000e+00> : vector<2x8x32xf32>
    %32 = tpu.matmul %31, %17, %cst_14 {dimension_numbers = #tpu.dot_dimension_numbers<[2], [1], [1], [2], [0, 0, 0, 1, 1, 2], [0], [0]>} : vector<2x8x8xbf16>, vector<2x8x32xbf16>, vector<2x8x32xf32> -> vector<2x8x32xf32>
    "tpu.trace_stop"() : () -> ()
    %33 = vector.extract_strided_slice %10 {offsets = [0, 0, 16], sizes = [2, 8, 16], strides = [1, 1, 1]} : vector<2x8x32xbf16> to vector<2x8x16xbf16>
    %34 = vector.extract_strided_slice %12 {offsets = [0, 0, 16], sizes = [2, 8, 16], strides = [1, 1, 1]} : vector<2x8x32xbf16> to vector<2x8x16xbf16>
    %35 = vector.extract_strided_slice %14 {offsets = [0, 0, 32], sizes = [2, 8, 32], strides = [1, 1, 1]} : vector<2x8x64xbf16> to vector<2x8x32xbf16>
    "tpu.trace_start"() <{level = 10 : i32, message = "bqa,bka->bqk"}> : () -> ()
    %cst_15 = arith.constant dense<0.000000e+00> : vector<2x8x8xf32>
    %36 = tpu.matmul %33, %34, %cst_15 {dimension_numbers = #tpu.dot_dimension_numbers<[2], [2], [1], [1], [0, 0, 0, 1, 1, 1], [0], [0]>} : vector<2x8x16xbf16>, vector<2x8x16xbf16>, vector<2x8x8xf32> -> vector<2x8x8xf32>
    "tpu.trace_stop"() : () -> ()
    %cst_16 = arith.constant 2.500000e-01 : f32
    %37 = vector.broadcast %cst_16 : f32 to vector<2x8x8xf32>
    %38 = arith.mulf %36, %37 : vector<2x8x8xf32>
    %cst_17 = arith.constant dense<0xFF800000> : vector<2x8xf32>
    %39 = vector.multi_reduction <maximumf>, %38, %cst_17 [2] : vector<2x8x8xf32> to vector<2x8xf32>
    %40 = vector.shape_cast %39 : vector<2x8xf32> to vector<2x8x1xf32>
    %41 = vector.broadcast %40 : vector<2x8x1xf32> to vector<2x8x8xf32>
    %42 = arith.subf %38, %41 : vector<2x8x8xf32>
    %43 = math.exp %42 : vector<2x8x8xf32>
    %cst_18 = arith.constant dense<0.000000e+00> : vector<2x8xf32>
    %44 = vector.multi_reduction <add>, %43, %cst_18 [2] : vector<2x8x8xf32> to vector<2x8xf32>
    %45 = vector.shape_cast %44 : vector<2x8xf32> to vector<2x8x1xf32>
    %46 = tpu.reciprocal %45 {approx = true} : vector<2x8x1xf32> -> vector<2x8x1xf32>
    %47 = vector.broadcast %46 : vector<2x8x1xf32> to vector<2x8x8xf32>
    %48 = arith.mulf %43, %47 : vector<2x8x8xf32>
    %49 = arith.truncf %48 : vector<2x8x8xf32> to vector<2x8x8xbf16>
    "tpu.trace_start"() <{level = 10 : i32, message = "bqk,bkd->bqd"}> : () -> ()
    %cst_19 = arith.constant dense<0.000000e+00> : vector<2x8x32xf32>
    %50 = tpu.matmul %49, %35, %cst_19 {dimension_numbers = #tpu.dot_dimension_numbers<[2], [1], [1], [2], [0, 0, 0, 1, 1, 2], [0], [0]>} : vector<2x8x8xbf16>, vector<2x8x32xbf16>, vector<2x8x32xf32> -> vector<2x8x32xf32>
    "tpu.trace_stop"() : () -> ()
    %51 = tpu.concatenate %32, %50 in 2 : vector<2x8x32xf32>, vector<2x8x32xf32> -> vector<2x8x64xf32>
    %52 = vector.shape_cast %51 : vector<2x8x64xf32> to vector<16x64xf32>
    %53 = arith.truncf %52 : vector<16x64xf32> to vector<16x64xbf16>
    %c0_20 = arith.constant 0 : index
    %c0_21 = arith.constant 0 : index
    %54 = vector.load %arg5[%c0_20, %c0_21] : memref<64x32xbf16, #tpu.memory_space<vmem>>, vector<64x32xbf16>
    %cst_22 = arith.constant dense<0.000000e+00> : vector<16x32xf32>
    %55 = tpu.matmul %53, %54, %cst_22 {dimension_numbers = #tpu.dot_dimension_numbers<[1], [0], [0], [1], [0, 0, 1, 1], [], []>} : vector<16x64xbf16>, vector<64x32xbf16>, vector<16x32xf32> -> vector<16x32xf32>
    %56 = arith.addf %1, %55 : vector<16x32xf32>
    %c0_23 = arith.constant 0 : index
    %c0_24 = arith.constant 0 : index
    %57 = vector.load %arg10[%c0_23, %c0_24] : memref<1x32xf32, #tpu.memory_space<vmem>>, vector<1x32xf32>
    %c0_25 = arith.constant 0 : index
    %c0_26 = arith.constant 0 : index
    %58 = vector.load %arg11[%c0_25, %c0_26] : memref<1x32xf32, #tpu.memory_space<vmem>>, vector<1x32xf32>
    %cst_27 = arith.constant dense<0.000000e+00> : vector<16xf32>
    %59 = vector.multi_reduction <add>, %56, %cst_27 [1] : vector<16x32xf32> to vector<16xf32>
    %60 = vector.shape_cast %59 : vector<16xf32> to vector<16x1xf32>
    %cst_28 = arith.constant 3.200000e+01 : f32
    %61 = vector.broadcast %cst_28 : f32 to vector<16x1xf32>
    %62 = arith.divf %60, %61 : vector<16x1xf32>
    %63 = vector.broadcast %62 : vector<16x1xf32> to vector<16x32xf32>
    %64 = arith.subf %56, %63 : vector<16x32xf32>
    %65 = arith.mulf %64, %64 : vector<16x32xf32>
    %cst_29 = arith.constant dense<0.000000e+00> : vector<16xf32>
    %66 = vector.multi_reduction <add>, %65, %cst_29 [1] : vector<16x32xf32> to vector<16xf32>
    %67 = vector.shape_cast %66 : vector<16xf32> to vector<16x1xf32>
    %cst_30 = arith.constant 3.200000e+01 : f32
    %68 = vector.broadcast %cst_30 : f32 to vector<16x1xf32>
    %69 = arith.divf %67, %68 : vector<16x1xf32>
    %70 = vector.broadcast %62 : vector<16x1xf32> to vector<16x32xf32>
    %71 = arith.subf %56, %70 : vector<16x32xf32>
    %cst_31 = arith.constant 9.99999974E-6 : f32
    %72 = vector.broadcast %cst_31 : f32 to vector<16x1xf32>
    %73 = arith.addf %69, %72 : vector<16x1xf32>
    %74 = math.rsqrt %73 : vector<16x1xf32>
    %75 = vector.broadcast %74 : vector<16x1xf32> to vector<16x32xf32>
    %76 = arith.mulf %71, %75 : vector<16x32xf32>
    %77 = vector.broadcast %57 : vector<1x32xf32> to vector<16x32xf32>
    %78 = arith.mulf %76, %77 : vector<16x32xf32>
    %79 = vector.broadcast %58 : vector<1x32xf32> to vector<16x32xf32>
    %80 = arith.addf %78, %79 : vector<16x32xf32>
    %81 = arith.truncf %80 : vector<16x32xf32> to vector<16x32xbf16>
    %c0_32 = arith.constant 0 : index
    %c0_33 = arith.constant 0 : index
    %82 = vector.load %arg8[%c0_32, %c0_33] : memref<32x32xbf16, #tpu.memory_space<vmem>>, vector<32x32xbf16>
    %cst_34 = arith.constant dense<0.000000e+00> : vector<16x32xf32>
    %83 = tpu.matmul %81, %82, %cst_34 {dimension_numbers = #tpu.dot_dimension_numbers<[1], [0], [0], [1], [0, 0, 1, 1], [], []>} : vector<16x32xbf16>, vector<32x32xbf16>, vector<16x32xf32> -> vector<16x32xf32>
    %c0_35 = arith.constant 0 : index
    %c0_36 = arith.constant 0 : index
    %84 = vector.load %arg9[%c0_35, %c0_36] : memref<1x32xf32, #tpu.memory_space<vmem>>, vector<1x32xf32>
    %85 = vector.broadcast %84 : vector<1x32xf32> to vector<16x32xf32>
    %86 = arith.addf %83, %85 : vector<16x32xf32>
    %cst_37 = arith.constant 0.000000e+00 : f32
    %87 = vector.broadcast %cst_37 : f32 to vector<16x32xf32>
    %88 = arith.cmpf ogt, %86, %87 : vector<16x32xf32>
    %cst_38 = arith.constant 0.000000e+00 : f32
    %89 = vector.broadcast %cst_38 : f32 to vector<16x32xf32>
    %90 = arith.minimumf %86, %89 : vector<16x32xf32>
    %91 = math.exp %90 : vector<16x32xf32>
    %cst_39 = arith.constant 1.000000e+00 : f32
    %92 = vector.broadcast %cst_39 : f32 to vector<16x32xf32>
    %93 = arith.subf %91, %92 : vector<16x32xf32>
    %94 = arith.select %88, %86, %93 : vector<16x32xi1>, vector<16x32xf32>
    %95 = arith.truncf %94 : vector<16x32xf32> to vector<16x32xbf16>
    %c0_40 = arith.constant 0 : index
    %c0_41 = arith.constant 0 : index
    %96 = vector.load %arg6[%c0_40, %c0_41] : memref<32x32xbf16, #tpu.memory_space<vmem>>, vector<32x32xbf16>
    %cst_42 = arith.constant dense<0.000000e+00> : vector<16x32xf32>
    %97 = tpu.matmul %95, %96, %cst_42 {dimension_numbers = #tpu.dot_dimension_numbers<[1], [0], [0], [1], [0, 0, 1, 1], [], []>} : vector<16x32xbf16>, vector<32x32xbf16>, vector<16x32xf32> -> vector<16x32xf32>
    %c0_43 = arith.constant 0 : index
    %c0_44 = arith.constant 0 : index
    %98 = vector.load %arg7[%c0_43, %c0_44] : memref<1x32xf32, #tpu.memory_space<vmem>>, vector<1x32xf32>
    %99 = vector.broadcast %98 : vector<1x32xf32> to vector<16x32xf32>
    %100 = arith.addf %97, %99 : vector<16x32xf32>
    %101 = arith.addf %80, %100 : vector<16x32xf32>
    %c0_45 = arith.constant 0 : index
    %c0_46 = arith.constant 0 : index
    %102 = vector.load %arg12[%c0_45, %c0_46] : memref<1x32xf32, #tpu.memory_space<vmem>>, vector<1x32xf32>
    %c0_47 = arith.constant 0 : index
    %c0_48 = arith.constant 0 : index
    %103 = vector.load %arg13[%c0_47, %c0_48] : memref<1x32xf32, #tpu.memory_space<vmem>>, vector<1x32xf32>
    %cst_49 = arith.constant dense<0.000000e+00> : vector<16xf32>
    %104 = vector.multi_reduction <add>, %101, %cst_49 [1] : vector<16x32xf32> to vector<16xf32>
    %105 = vector.shape_cast %104 : vector<16xf32> to vector<16x1xf32>
    %cst_50 = arith.constant 3.200000e+01 : f32
    %106 = vector.broadcast %cst_50 : f32 to vector<16x1xf32>
    %107 = arith.divf %105, %106 : vector<16x1xf32>
    %108 = vector.broadcast %107 : vector<16x1xf32> to vector<16x32xf32>
    %109 = arith.subf %101, %108 : vector<16x32xf32>
    %110 = arith.mulf %109, %109 : vector<16x32xf32>
    %cst_51 = arith.constant dense<0.000000e+00> : vector<16xf32>
    %111 = vector.multi_reduction <add>, %110, %cst_51 [1] : vector<16x32xf32> to vector<16xf32>
    %112 = vector.shape_cast %111 : vector<16xf32> to vector<16x1xf32>
    %cst_52 = arith.constant 3.200000e+01 : f32
    %113 = vector.broadcast %cst_52 : f32 to vector<16x1xf32>
    %114 = arith.divf %112, %113 : vector<16x1xf32>
    %115 = vector.broadcast %107 : vector<16x1xf32> to vector<16x32xf32>
    %116 = arith.subf %101, %115 : vector<16x32xf32>
    %cst_53 = arith.constant 9.99999974E-6 : f32
    %117 = vector.broadcast %cst_53 : f32 to vector<16x1xf32>
    %118 = arith.addf %114, %117 : vector<16x1xf32>
    %119 = math.rsqrt %118 : vector<16x1xf32>
    %120 = vector.broadcast %119 : vector<16x1xf32> to vector<16x32xf32>
    %121 = arith.mulf %116, %120 : vector<16x32xf32>
    %122 = vector.broadcast %102 : vector<1x32xf32> to vector<16x32xf32>
    %123 = arith.mulf %121, %122 : vector<16x32xf32>
    %124 = vector.broadcast %103 : vector<1x32xf32> to vector<16x32xf32>
    %125 = arith.addf %123, %124 : vector<16x32xf32>
    %126 = vector.shape_cast %125 : vector<16x32xf32> to vector<2x8x32xf32>
    %c0_54 = arith.constant 0 : index
    %c0_55 = arith.constant 0 : index
    %c0_56 = arith.constant 0 : index
    %127 = vector.load %arg14[%c0_54, %c0_55, %c0_56] : memref<2x8x32xf32, #tpu.memory_space<vmem>>, vector<2x8x32xf32>
    tpu.vector_store %arg14[%c0_54, %c0_55, %c0_56], %126 {strides = array<i32>} : memref<2x8x32xf32, #tpu.memory_space<vmem>>, vector<2x8x32xf32>,
    return
  }
  func.func @transform_0(%arg0: i32) -> (i32, i32, i32) {
    %c0_i32 = arith.constant 0 : i32
    %c0_i32_0 = arith.constant 0 : i32
    %c0_i32_1 = arith.constant 0 : i32
    return %arg0, %c0_i32, %c0_i32_0 : i32, i32, i32
  }
  func.func @transform_1(%arg0: i32) -> (i32, i32) {
    %c0_i32 = arith.constant 0 : i32
    %c0_i32_0 = arith.constant 0 : i32
    %c0_i32_1 = arith.constant 0 : i32
    return %c0_i32, %c0_i32_0 : i32, i32
  }
  func.func @transform_2(%arg0: i32) -> (i32, i32) {
    %c0_i32 = arith.constant 0 : i32
    %c0_i32_0 = arith.constant 0 : i32
    %c0_i32_1 = arith.constant 0 : i32
    return %c0_i32, %c0_i32_0 : i32, i32
  }
  func.func @transform_3(%arg0: i32) -> (i32, i32) {
    %c0_i32 = arith.constant 0 : i32
    %c0_i32_0 = arith.constant 0 : i32
    %c0_i32_1 = arith.constant 0 : i32
    return %c0_i32, %c0_i32_0 : i32, i32
  }
  func.func @transform_4(%arg0: i32) -> (i32, i32) {
    %c0_i32 = arith.constant 0 : i32
    %c0_i32_0 = arith.constant 0 : i32
    %c0_i32_1 = arith.constant 0 : i32
    return %c0_i32, %c0_i32_0 : i32, i32
  }
  func.func @transform_5(%arg0: i32) -> (i32, i32) {
    %c0_i32 = arith.constant 0 : i32
    %c0_i32_0 = arith.constant 0 : i32
    %c0_i32_1 = arith.constant 0 : i32
    return %c0_i32, %c0_i32_0 : i32, i32
  }
  func.func @transform_6(%arg0: i32) -> (i32, i32) {
    %c0_i32 = arith.constant 0 : i32
    %c0_i32_0 = arith.constant 0 : i32
    %c0_i32_1 = arith.constant 0 : i32
    return %c0_i32, %c0_i32_0 : i32, i32
  }
  func.func @transform_7(%arg0: i32) -> (i32, i32) {
    %c0_i32 = arith.constant 0 : i32
    %c0_i32_0 = arith.constant 0 : i32
    %c0_i32_1 = arith.constant 0 : i32
    return %c0_i32, %c0_i32_0 : i32, i32
  }
  func.func @transform_8(%arg0: i32) -> (i32, i32) {
    %c0_i32 = arith.constant 0 : i32
    %c0_i32_0 = arith.constant 0 : i32
    %c0_i32_1 = arith.constant 0 : i32
    return %c0_i32, %c0_i32_0 : i32, i32
  }
  func.func @transform_9(%arg0: i32) -> (i32, i32) {
    %c0_i32 = arith.constant 0 : i32
    %c0_i32_0 = arith.constant 0 : i32
    %c0_i32_1 = arith.constant 0 : i32
    return %c0_i32, %c0_i32_0 : i32, i32
  }
  func.func @transform_10(%arg0: i32) -> (i32, i32) {
    %c0_i32 = arith.constant 0 : i32
    %c0_i32_0 = arith.constant 0 : i32
    %c0_i32_1 = arith.constant 0 : i32
    return %c0_i32, %c0_i32_0 : i32, i32
  }
  func.func @transform_11(%arg0: i32) -> (i32, i32) {
    %c0_i32 = arith.constant 0 : i32
    %c0_i32_0 = arith.constant 0 : i32
    %c0_i32_1 = arith.constant 0 : i32
    return %c0_i32, %c0_i32_0 : i32, i32
  }
  func.func @transform_12(%arg0: i32) -> (i32, i32) {
    %c0_i32 = arith.constant 0 : i32
    %c0_i32_0 = arith.constant 0 : i32
    %c0_i32_1 = arith.constant 0 : i32
    return %c0_i32, %c0_i32_0 : i32, i32
  }
  func.func @transform_13(%arg0: i32) -> (i32, i32, i32) {
    %c0_i32 = arith.constant 0 : i32
    %c0_i32_0 = arith.constant 0 : i32
    %c0_i32_1 = arith.constant 0 : i32
    return %arg0, %c0_i32, %c0_i32_0 : i32, i32, i32
  }
}

</mosaic_0001>

<llo_original>
// kernel: tpu_custom_call.1
$region0: #{tpu_custom_call.1}
  #allocation0 [shape = 'u32[]', space=smem, size = 0x4, offset = 0x4, fixed_abs, tag = 'smem constant byte address 0x4 - core index']
  #allocation1 [shape = 'u32[144,128]{1,0:T(1,128)}', space=vmem, size = 0x12000, scoped, tag = 'internal scratch']
  %s0 = inlined_call_operand.vmem [shape: f32[2,8,32], index: 0, kind: input, shape index: {}]
  %s1 = inlined_call_operand.vmem [shape: bf16[32,32], index: 1, kind: input, shape index: {}]
  %s2 = inlined_call_operand.vmem [shape: bf16[32,32], index: 2, kind: input, shape index: {}]
  %s3 = inlined_call_operand.hbm [shape: bf16[32,64], index: 3, kind: input, shape index: {}]
  %s4 = inlined_call_operand.vmem [shape: bf16[64,32], index: 4, kind: input, shape index: {}]
  %s5 = inlined_call_operand.hbm [shape: bf16[32,32], index: 5, kind: input, shape index: {}]
  %s6 = inlined_call_operand.vmem [shape: f32[1,32], index: 6, kind: input, shape index: {}]
  %s7 = inlined_call_operand.hbm [shape: bf16[32,32], index: 7, kind: input, shape index: {}]
  %s8 = inlined_call_operand.vmem [shape: f32[1,32], index: 8, kind: input, shape index: {}]
  %s9 = inlined_call_operand.vmem [shape: f32[1,32], index: 9, kind: input, shape index: {}]
  %s10 = inlined_call_operand.vmem [shape: f32[1,32], index: 10, kind: input, shape index: {}]
  %s11 = inlined_call_operand.vmem [shape: f32[1,32], index: 11, kind: input, shape index: {}]
  %s12 = inlined_call_operand.vmem [shape: f32[1,32], index: 12, kind: input, shape index: {}]
  %s13 = inlined_call_operand.hbm [shape: f32[2,8,32], index: 13, kind: output, shape index: {}]
  %s14 = sld [smem:[#allocation0]]
  $region74: #{tpu_custom_call.1} parent=0
    _
  %s16 = ssub.s32 1, %s14
  %s17 = scalar_select 0, %s16, %s14
  $region1: #{tpu_custom_call.1} parent=0
    #allocation2 [shape = 'u8[8192]{0}', space=vmem, size = 0x2000, scoped, tag = 'input window, operand 3, single buffered']
    #allocation3 [shape = 's32[1]{0}', space=sflag, size = 0x4, scoped, tag = 'scoped memory for tpu_custom_call.1']
    #allocation4 [shape = 's32[1]{0}', space=sflag, size = 0x4, scoped, tag = 'scoped memory for tpu_custom_call.1']
    #allocation5 [shape = 'u8[8192]{0}', space=vmem, size = 0x2000, scoped, tag = 'input window, operand 5, single buffered']
    #allocation6 [shape = 's32[1]{0}', space=sflag, size = 0x4, scoped, tag = 'scoped memory for tpu_custom_call.1']
    #allocation7 [shape = 'u8[8192]{0}', space=vmem, size = 0x2000, scoped, tag = 'input window, operand 7, single buffered']
    #allocation8 [shape = 'u8[8192]{0}', space=vmem, size = 0x2000, scoped, tag = 'output window, operand 0, single buffered']
    %18 = vsyncpa [#allocation3], 0
    %19 = vsyncpa [#allocation6], 0
    %20 = vsyncpa [#allocation4], 0
    // Predicated region
    $region2: #{tpu_custom_call.1} parent=1 // pred_check
      _
    $region3: #{tpu_custom_call.1} parent=1 // pred_check_branch
      %22 = sbr.rel (0) target = $region5
    $region4: #{tpu_custom_call.1} parent=1 // pred_region
      _
    $region5: #{tpu_custom_call.1} parent=1 // pred_fallthru
      _
    // Predicated region
    $region6: #{tpu_custom_call.1} parent=1 // pred_check
      _
    $region7: #{tpu_custom_call.1} parent=1 // pred_check_branch
      %24 = sbr.rel (0) target = $region9
    $region8: #{tpu_custom_call.1} parent=1 // pred_region
      _
    $region9: #{tpu_custom_call.1} parent=1 // pred_fallthru
      _
    // Predicated region
    $region10: #{tpu_custom_call.1} parent=1 // pred_check
      _
    $region11: #{tpu_custom_call.1} parent=1 // pred_check_branch
      %26 = sbr.rel (0) target = $region13
    $region12: #{tpu_custom_call.1} parent=1 // pred_region
      _
    $region13: #{tpu_custom_call.1} parent=1 // pred_fallthru
      _
    // Predicated region
    $region14: #{tpu_custom_call.1} parent=1 // pred_check
      _
    $region15: #{tpu_custom_call.1} parent=1 // pred_check_branch
      %28 = sbr.rel (0) target = $region17
    $region16: #{tpu_custom_call.1} parent=1 // pred_region
      %s30 = ssub.s32 256, 256
      %31 = vsyncadd [#allocation3], %s30
      %s32 = sshll.u32 [#allocation2], 4
      %s33 = int_to_ptr.vmem [resolvable:$true] %s32
      %38 = dma.hbm_to_vmem [thread:$0]  %s3, 256, %s33, [#allocation3], 64, 64, 4
    $region17: #{tpu_custom_call.1} parent=1 // pred_fallthru
      _
    // Predicated region
    $region18: #{tpu_custom_call.1} parent=1 // pred_check
      _
    $region19: #{tpu_custom_call.1} parent=1 // pred_check_branch
      %40 = sbr.rel (0) target = $region21
    $region20: #{tpu_custom_call.1} parent=1 // pred_region
      _
    $region21: #{tpu_custom_call.1} parent=1 // pred_fallthru
      _
    // Predicated region
    $region22: #{tpu_custom_call.1} parent=1 // pred_check
      _
    $region23: #{tpu_custom_call.1} parent=1 // pred_check_branch
      %42 = sbr.rel (0) target = $region25
    $region24: #{tpu_custom_call.1} parent=1 // pred_region
      %s44 = ssub.s32 256, 256
      %45 = vsyncadd [#allocation6], %s44
      %s46 = sshll.u32 [#allocation5], 4
      %s47 = int_to_ptr.vmem [resolvable:$true] %s46
      %52 = dma.hbm_to_vmem [thread:$0]  %s5, 256, %s47, [#allocation6], 64, 64, 4
    $region25: #{tpu_custom_call.1} parent=1 // pred_fallthru
      _
    // Predicated region
    $region26: #{tpu_custom_call.1} parent=1 // pred_check
      _
    $region27: #{tpu_custom_call.1} parent=1 // pred_check_branch
      %54 = sbr.rel (0) target = $region29
    $region28: #{tpu_custom_call.1} parent=1 // pred_region
      _
    $region29: #{tpu_custom_call.1} parent=1 // pred_fallthru
      _
    // Predicated region
    $region30: #{tpu_custom_call.1} parent=1 // pred_check
      _
    $region31: #{tpu_custom_call.1} parent=1 // pred_check_branch
      %56 = sbr.rel (0) target = $region33
    $region32: #{tpu_custom_call.1} parent=1 // pred_region
      %s58 = ssub.s32 256, 256
      %59 = vsyncadd [#allocation6], %s58
      %s60 = sshll.u32 [#allocation7], 4
      %s61 = int_to_ptr.vmem [resolvable:$true] %s60
      %66 = dma.hbm_to_vmem [thread:$0]  %s7, 256, %s61, [#allocation6], 64, 64, 4
    $region33: #{tpu_custom_call.1} parent=1 // pred_fallthru
      _
    // Predicated region
    $region34: #{tpu_custom_call.1} parent=1 // pred_check
      _
    $region35: #{tpu_custom_call.1} parent=1 // pred_check_branch
      %68 = sbr.rel (0) target = $region37
    $region36: #{tpu_custom_call.1} parent=1 // pred_region
      _
    $region37: #{tpu_custom_call.1} parent=1 // pred_fallthru
      _
    // Predicated region
    $region38: #{tpu_custom_call.1} parent=1 // pred_check
      _
    $region39: #{tpu_custom_call.1} parent=1 // pred_check_branch
      %70 = sbr.rel (0) target = $region41
    $region40: #{tpu_custom_call.1} parent=1 // pred_region
      _
    $region41: #{tpu_custom_call.1} parent=1 // pred_fallthru
      _
    // Predicated region
    $region42: #{tpu_custom_call.1} parent=1 // pred_check
      _
    $region43: #{tpu_custom_call.1} parent=1 // pred_check_branch
      %72 = sbr.rel (0) target = $region45
    $region44: #{tpu_custom_call.1} parent=1 // pred_region
      _
    $region45: #{tpu_custom_call.1} parent=1 // pred_fallthru
      _
    // Predicated region
    $region46: #{tpu_custom_call.1} parent=1 // pred_check
      _
    $region47: #{tpu_custom_call.1} parent=1 // pred_check_branch
      %74 = sbr.rel (0) target = $region49
    $region48: #{tpu_custom_call.1} parent=1 // pred_region
      _
    $region49: #{tpu_custom_call.1} parent=1 // pred_fallthru
      _
    // Predicated region
    $region50: #{tpu_custom_call.1} parent=1 // pred_check
      _
    $region51: #{tpu_custom_call.1} parent=1 // pred_check_branch
      %76 = sbr.rel (0) target = $region53
    $region52: #{tpu_custom_call.1} parent=1 // pred_region
      _
    $region53: #{tpu_custom_call.1} parent=1 // pred_fallthru
      _
    // Predicated region
    $region54: #{tpu_custom_call.1} parent=1 // pred_check
      _
    $region55: #{tpu_custom_call.1} parent=1 // pred_check_branch
      %78 = sbr.rel (0) target = $region57
    $region56: #{tpu_custom_call.1} parent=1 // pred_region
      %79 = dma.done [#allocation3], 256
    $region57: #{tpu_custom_call.1} parent=1 // pred_fallthru
      _
    // Predicated region
    $region58: #{tpu_custom_call.1} parent=1 // pred_check
      _
    $region59: #{tpu_custom_call.1} parent=1 // pred_check_branch
      %81 = sbr.rel (0) target = $region61
    $region60: #{tpu_custom_call.1} parent=1 // pred_region
      %82 = dma.done [#allocation6], 256
    $region61: #{tpu_custom_call.1} parent=1 // pred_fallthru
      _
    // Predicated region
    $region62: #{tpu_custom_call.1} parent=1 // pred_check
      _
    $region63: #{tpu_custom_call.1} parent=1 // pred_check_branch
      %84 = sbr.rel (0) target = $region65
    $region64: #{tpu_custom_call.1} parent=1 // pred_region
      %85 = dma.done [#allocation6], 256
    $region65: #{tpu_custom_call.1} parent=1 // pred_fallthru
      _
    %v87 = vld [vmem:[%s0] sm:$0xff]
    %v88 = vld [vmem:[%s0 + $0x8] sm:$0xff]
    %v89 = vpack.c.bf16 %v88, %v87
    %v90 = vld [vmem:[%s1] sm:$0xf]
    %v91 = vld [vmem:[%s1 + $0x4] sm:$0xf]
    %v92 = vld [vmem:[%s1 + $0x8] sm:$0xf]
    %v93 = vld [vmem:[%s1 + $0xc] sm:$0xf]
    %v98 = vunpack.c.l.b16 %v90
    %v99 = vunpack.c.l.b16 %v91
    %v100 = vunpack.c.l.b16 %v92
    %v101 = vunpack.c.l.b16 %v93
    %v102 = vpack.c.b16 %v99, %v98
    %v103 = vpack.c.b16 %v101, %v100
    %vm106 = vcmask 261120
    %v108 = vsel %vm106, %v89, 0
    %110 = vmatprep.subr.bf16.mxu0 0
    %111 = vmatpush1.bf16.msra.mxu0 0
    %112 = vmatprep.subr.bf16.mxu0 0
    %113 = vmatpush1.bf16.msra.mxu0 0
    %114 = vmatprep.subr.bf16.mxu0 0
    %115 = vmatpush1.bf16.msra.mxu0 0
    %116 = vmatprep.subr.bf16.mxu0 0
    %117 = vmatpush1.bf16.msra.mxu0 0
    %118 = vmatprep.subr.bf16.mxu0 0
    %119 = vmatpush1.bf16.msra.mxu0 0
    %120 = vmatprep.subr.bf16.mxu0 0
    %121 = vmatpush1.bf16.msra.mxu0 0
    %122 = vmatprep.subr.bf16.mxu0 0
    %123 = vmatpush1.bf16.msra.mxu0 %v103
    %124 = vmatprep.subr.bf16.mxu0 0
    %125 = vmatpush1.bf16.msra.mxu0 %v102
    %126 = vmatprep.subr.bf16.mxu0 0
    %127 = vmatpush2.bf16.msra.mxu0 0
    %128 = vmatprep.subr.bf16.mxu0 0
    %129 = vmatpush2.bf16.msra.mxu0 0
    %130 = vmatprep.subr.bf16.mxu0 0
    %131 = vmatpush2.bf16.msra.mxu0 0
    %132 = vmatprep.subr.bf16.mxu0 0
    %133 = vmatpush2.bf16.msra.mxu0 0
    %134 = vmatprep.subr.bf16.mxu0 0
    %135 = vmatpush2.bf16.msra.mxu0 0
    %136 = vmatprep.subr.bf16.mxu0 0
    %137 = vmatpush2.bf16.msra.mxu0 0
    %138 = vmatprep.subr.bf16.mxu0 0
    %139 = vmatpush2.bf16.msra.mxu0 0
    %140 = vmatprep.subr.bf16.mxu0 0
    %141 = vmatpush2.bf16.msra.mxu0 0
    %142 = vmatprep.mubr.bf16.mxu0 0
    %143 = vmatmul.mubr.bf16.gmra.mxu0 %v108
    %v144 = vpop.f32.mrf.mxu0
    %v145 = vadd.f32 0.0, %v144
    %v146 = vpop.f32.mrf.mxu0
    %v147 = vpop.f32.mrf.mxu0
    %v148 = vadd.f32 0.0, %v147
    %v149 = vpop.f32.mrf.mxu0
    %150 = vdwg.mxu0
    %v151 = vld [vmem:[%s2] sm:$0xf]
    %v152 = vld [vmem:[%s2 + $0x4] sm:$0xf]
    %v153 = vld [vmem:[%s2 + $0x8] sm:$0xf]
    %v154 = vld [vmem:[%s2 + $0xc] sm:$0xf]
    %v159 = vunpack.c.l.b16 %v151
    %v160 = vunpack.c.l.b16 %v152
    %v161 = vunpack.c.l.b16 %v153
    %v162 = vunpack.c.l.b16 %v154
    %v163 = vpack.c.b16 %v160, %v159
    %v164 = vpack.c.b16 %v162, %v161
    %167 = vmatprep.subr.bf16.mxu0 0
    %168 = vmatpush1.bf16.msra.mxu0 0
    %169 = vmatprep.subr.bf16.mxu0 0
    %170 = vmatpush1.bf16.msra.mxu0 0
    %171 = vmatprep.subr.bf16.mxu0 0
    %172 = vmatpush1.bf16.msra.mxu0 0
    %173 = vmatprep.subr.bf16.mxu0 0
    %174 = vmatpush1.bf16.msra.mxu0 0
    %175 = vmatprep.subr.bf16.mxu0 0
    %176 = vmatpush1.bf16.msra.mxu0 0
    %177 = vmatprep.subr.bf16.mxu0 0
    %178 = vmatpush1.bf16.msra.mxu0 0
    %179 = vmatprep.subr.bf16.mxu0 0
    %180 = vmatpush1.bf16.msra.mxu0 %v164
    %181 = vmatprep.subr.bf16.mxu0 0
    %182 = vmatpush1.bf16.msra.mxu0 %v163
    %183 = vmatprep.subr.bf16.mxu0 0
    %184 = vmatpush2.bf16.msra.mxu0 0
    %185 = vmatprep.subr.bf16.mxu0 0
    %186 = vmatpush2.bf16.msra.mxu0 0
    %187 = vmatprep.subr.bf16.mxu0 0
    %188 = vmatpush2.bf16.msra.mxu0 0
    %189 = vmatprep.subr.bf16.mxu0 0
    %190 = vmatpush2.bf16.msra.mxu0 0
    %191 = vmatprep.subr.bf16.mxu0 0
    %192 = vmatpush2.bf16.msra.mxu0 0
    %193 = vmatprep.subr.bf16.mxu0 0
    %194 = vmatpush2.bf16.msra.mxu0 0
    %195 = vmatprep.subr.bf16.mxu0 0
    %196 = vmatpush2.bf16.msra.mxu0 0
    %197 = vmatprep.subr.bf16.mxu0 0
    %198 = vmatpush2.bf16.msra.mxu0 0
    %199 = vmatprep.mubr.bf16.mxu0 0
    %200 = vmatmul.mubr.bf16.gmra.mxu0 %v108
    %v201 = vpop.f32.mrf.mxu0
    %v202 = vadd.f32 0.0, %v201
    %v203 = vpop.f32.mrf.mxu0
    %v204 = vpop.f32.mrf.mxu0
    %v205 = vadd.f32 0.0, %v204
    %v206 = vpop.f32.mrf.mxu0
    %207 = vdwg.mxu0
    %v208 = vld [vmem:[#allocation2] sm:$0xf]
    %v209 = vld [vmem:[#allocation2 + $0x4] sm:$0xf]
    %v210 = vld [vmem:[#allocation2 + $0x8] sm:$0xf]
    %v211 = vld [vmem:[#allocation2 + $0xc] sm:$0xf]
    %v216 = vunpack.c.l.b16 %v208
    %v217 = vunpack.c.l.b16 %v209
    %v218 = vunpack.c.l.b16 %v210
    %v219 = vunpack.c.l.b16 %v211
    %v220 = vpack.c.b16 %v217, %v216
    %v221 = vpack.c.b16 %v219, %v218
    %224 = vmatprep.subr.bf16.mxu0 0
    %225 = vmatpush1.bf16.msra.mxu0 0
    %226 = vmatprep.subr.bf16.mxu0 0
    %227 = vmatpush1.bf16.msra.mxu0 0
    %228 = vmatprep.subr.bf16.mxu0 0
    %229 = vmatpush1.bf16.msra.mxu0 0
    %230 = vmatprep.subr.bf16.mxu0 0
    %231 = vmatpush1.bf16.msra.mxu0 0
    %232 = vmatprep.subr.bf16.mxu0 0
    %233 = vmatpush1.bf16.msra.mxu0 0
    %234 = vmatprep.subr.bf16.mxu0 0
    %235 = vmatpush1.bf16.msra.mxu0 0
    %236 = vmatprep.subr.bf16.mxu0 0
    %237 = vmatpush1.bf16.msra.mxu0 %v221
    %238 = vmatprep.subr.bf16.mxu0 0
    %239 = vmatpush1.bf16.msra.mxu0 %v220
    %240 = vmatprep.subr.bf16.mxu0 0
    %241 = vmatpush2.bf16.msra.mxu0 0
    %242 = vmatprep.subr.bf16.mxu0 0
    %243 = vmatpush2.bf16.msra.mxu0 0
    %244 = vmatprep.subr.bf16.mxu0 0
    %245 = vmatpush2.bf16.msra.mxu0 0
    %246 = vmatprep.subr.bf16.mxu0 0
    %247 = vmatpush2.bf16.msra.mxu0 0
    %248 = vmatprep.subr.bf16.mxu0 0
    %249 = vmatpush2.bf16.msra.mxu0 0
    %250 = vmatprep.subr.bf16.mxu0 0
    %251 = vmatpush2.bf16.msra.mxu0 0
    %252 = vmatprep.subr.bf16.mxu0 0
    %253 = vmatpush2.bf16.msra.mxu0 0
    %254 = vmatprep.subr.bf16.mxu0 0
    %255 = vmatpush2.bf16.msra.mxu0 0
    %256 = vmatprep.mubr.bf16.mxu0 0
    %257 = vmatmul.mubr.bf16.gmra.mxu0 %v108
    %v258 = vpop.f32.mrf.mxu0
    %v259 = vadd.f32 0.0, %v258
    %v260 = vpop.f32.mrf.mxu0
    %v261 = vpop.f32.mrf.mxu0
    %v262 = vadd.f32 0.0, %v261
    %v263 = vpop.f32.mrf.mxu0
    %264 = vdwg.mxu0
    %v265 = vpack.c.bf16 %v145, %v145
    %v266 = vpack.c.bf16 %v148, %v148
    %v267 = vpack.c.bf16 %v202, %v202
    %v268 = vpack.c.bf16 %v205, %v205
    %v269 = vpack.c.bf16 %v259, %v259
    %v270 = vpack.c.bf16 %v262, %v262
    %vm271 = vcmask 130048
    %v273 = vsel %vm271, %v265, 0
    %v276 = vsel %vm271, %v267, 0
    %278 = vmatprep.subr.bf16.mxu0 0
    %279 = vmatpush1.bf16.xpose.msra.mxu0 0
    %280 = vmatprep.subr.bf16.mxu0 0
    %281 = vmatpush1.bf16.xpose.msra.mxu0 0
    %282 = vmatprep.subr.bf16.mxu0 0
    %283 = vmatpush1.bf16.xpose.msra.mxu0 0
    %284 = vmatprep.subr.bf16.mxu0 0
    %285 = vmatpush1.bf16.xpose.msra.mxu0 0
    %286 = vmatprep.subr.bf16.mxu0 0
    %287 = vmatpush1.bf16.xpose.msra.mxu0 0
    %288 = vmatprep.subr.bf16.mxu0 0
    %289 = vmatpush1.bf16.xpose.msra.mxu0 0
    %290 = vmatprep.subr.bf16.mxu0 0
    %291 = vmatpush1.bf16.xpose.msra.mxu0 0
    %292 = vmatprep.subr.bf16.mxu0 0
    %293 = vmatpush1.bf16.xpose.msra.mxu0 %v276
    %294 = vmatprep.subr.bf16.mxu0 0
    %295 = vmatpush2.bf16.xpose.msra.mxu0 0
    %296 = vmatprep.subr.bf16.mxu0 0
    %297 = vmatpush2.bf16.xpose.msra.mxu0 0
    %298 = vmatprep.subr.bf16.mxu0 0
    %299 = vmatpush2.bf16.xpose.msra.mxu0 0
    %300 = vmatprep.subr.bf16.mxu0 0
    %301 = vmatpush2.bf16.xpose.msra.mxu0 0
    %302 = vmatprep.subr.bf16.mxu0 0
    %303 = vmatpush2.bf16.xpose.msra.mxu0 0
    %304 = vmatprep.subr.bf16.mxu0 0
    %305 = vmatpush2.bf16.xpose.msra.mxu0 0
    %306 = vmatprep.subr.bf16.mxu0 0
    %307 = vmatpush2.bf16.xpose.msra.mxu0 0
    %308 = vmatprep.subr.bf16.mxu0 0
    %309 = vmatpush2.bf16.xpose.msra.mxu0 0
    %310 = vmatprep.mubr.bf16.mxu0 0
    %311 = vmatmul.mubr.bf16.gmra.mxu0 %v273
    %v312 = vpop.f32.mrf.mxu0
    %v313 = vadd.f32 0.0, %v312
    %v314 = vpop.f32.mrf.mxu0
    %v315 = vpop.f32.mrf.mxu0
    %v316 = vpop.f32.mrf.mxu0
    %317 = vdwg.mxu0
    %v319 = vsel %vm271, %v266, 0
    %v322 = vsel %vm271, %v268, 0
    %324 = vmatprep.subr.bf16.mxu0 0
    %325 = vmatpush1.bf16.xpose.msra.mxu0 0
    %326 = vmatprep.subr.bf16.mxu0 0
    %327 = vmatpush1.bf16.xpose.msra.mxu0 0
    %328 = vmatprep.subr.bf16.mxu0 0
    %329 = vmatpush1.bf16.xpose.msra.mxu0 0
    %330 = vmatprep.subr.bf16.mxu0 0
    %331 = vmatpush1.bf16.xpose.msra.mxu0 0
    %332 = vmatprep.subr.bf16.mxu0 0
    %333 = vmatpush1.bf16.xpose.msra.mxu0 0
    %334 = vmatprep.subr.bf16.mxu0 0
    %335 = vmatpush1.bf16.xpose.msra.mxu0 0
    %336 = vmatprep.subr.bf16.mxu0 0
    %337 = vmatpush1.bf16.xpose.msra.mxu0 0
    %338 = vmatprep.subr.bf16.mxu0 0
    %339 = vmatpush1.bf16.xpose.msra.mxu0 %v322
    %340 = vmatprep.subr.bf16.mxu0 0
    %341 = vmatpush2.bf16.xpose.msra.mxu0 0
    %342 = vmatprep.subr.bf16.mxu0 0
    %343 = vmatpush2.bf16.xpose.msra.mxu0 0
    %344 = vmatprep.subr.bf16.mxu0 0
    %345 = vmatpush2.bf16.xpose.msra.mxu0 0
    %346 = vmatprep.subr.bf16.mxu0 0
    %347 = vmatpush2.bf16.xpose.msra.mxu0 0
    %348 = vmatprep.subr.bf16.mxu0 0
    %349 = vmatpush2.bf16.xpose.msra.mxu0 0
    %350 = vmatprep.subr.bf16.mxu0 0
    %351 = vmatpush2.bf16.xpose.msra.mxu0 0
    %352 = vmatprep.subr.bf16.mxu0 0
    %353 = vmatpush2.bf16.xpose.msra.mxu0 0
    %354 = vmatprep.subr.bf16.mxu0 0
    %355 = vmatpush2.bf16.xpose.msra.mxu0 0
    %356 = vmatprep.mubr.bf16.mxu0 0
    %357 = vmatmul.mubr.bf16.gmra.mxu0 %v319
    %v358 = vpop.f32.mrf.mxu0
    %v359 = vadd.f32 0.0, %v358
    %v360 = vpop.f32.mrf.mxu0
    %v361 = vpop.f32.mrf.mxu0
    %v362 = vpop.f32.mrf.mxu0
    %363 = vdwg.mxu0
    %v364 = vmul.f32 %v313, 0.25
    %v365 = vmul.f32 %v359, 0.25
    %vm366 = vcmask 64512
    %v367 = vsel %vm366, %v364, -inf
    %368 = vmax.xlane.f32.xlu0 %v367
    %v369 = vpop.xlane.xlu0 %368
    %v370 = vsel %vm366, %v365, -inf
    %371 = vmax.xlane.f32.xlu0 %v370
    %v372 = vpop.xlane.xlu0 %371
    %v373 = vsub.f32 %v364, %v369
    %v374 = vsub.f32 %v365, %v372
    %v375 = vmul.f32 %v373, 1.442695
    %v376 = vpow.pop %v375
    %v377 = vmul.f32 %v374, 1.442695
    %v378 = vpow.pop %v377
    %v379 = vsel %vm366, %v376, 0.0
    %380 = vadd.xlane.f32.xlu0 %v379
    %v381 = vpop.xlane.xlu0 %380
    %v382 = vsel %vm366, %v378, 0.0
    %383 = vadd.xlane.f32.xlu0 %v382
    %v384 = vpop.xlane.xlu0 %383
    %v385 = vrcp.pop %v381
    %v386 = vrcp.pop %v384
    %v387 = vmul.f32 %v376, %v385
    %v388 = vmul.f32 %v378, %v386
    %v389 = vpack.c.bf16 %v387, %v387
    %v390 = vpack.c.bf16 %v388, %v388
    %v392 = vsel %vm366, %v389, 0
    %vm394 = vcmask 1043456
    %v396 = vsel %vm394, %v269, 0
    %398 = vmatprep.subr.bf16.mxu0 0
    %399 = vmatpush1.bf16.msra.mxu0 0
    %400 = vmatprep.subr.bf16.mxu0 0
    %401 = vmatpush1.bf16.msra.mxu0 0
    %402 = vmatprep.subr.bf16.mxu0 0
    %403 = vmatpush1.bf16.msra.mxu0 0
    %404 = vmatprep.subr.bf16.mxu0 0
    %405 = vmatpush1.bf16.msra.mxu0 0
    %406 = vmatprep.subr.bf16.mxu0 0
    %407 = vmatpush1.bf16.msra.mxu0 0
    %408 = vmatprep.subr.bf16.mxu0 0
    %409 = vmatpush1.bf16.msra.mxu0 0
    %410 = vmatprep.subr.bf16.mxu0 0
    %411 = vmatpush1.bf16.msra.mxu0 0
    %412 = vmatprep.subr.bf16.mxu0 0
    %413 = vmatpush1.bf16.msra.mxu0 %v396
    %414 = vmatprep.subr.bf16.mxu0 0
    %415 = vmatpush2.bf16.msra.mxu0 0
    %416 = vmatprep.subr.bf16.mxu0 0
    %417 = vmatpush2.bf16.msra.mxu0 0
    %418 = vmatprep.subr.bf16.mxu0 0
    %419 = vmatpush2.bf16.msra.mxu0 0
    %420 = vmatprep.subr.bf16.mxu0 0
    %421 = vmatpush2.bf16.msra.mxu0 0
    %422 = vmatprep.subr.bf16.mxu0 0
    %423 = vmatpush2.bf16.msra.mxu0 0
    %424 = vmatprep.subr.bf16.mxu0 0
    %425 = vmatpush2.bf16.msra.mxu0 0
    %426 = vmatprep.subr.bf16.mxu0 0
    %427 = vmatpush2.bf16.msra.mxu0 0
    %428 = vmatprep.subr.bf16.mxu0 0
    %429 = vmatpush2.bf16.msra.mxu0 0
    %430 = vmatprep.mubr.bf16.mxu0 0
    %431 = vmatmul.mubr.bf16.gmra.mxu0 %v392
    %v432 = vpop.f32.mrf.mxu0
    %v433 = vadd.f32 0.0, %v432
    %v434 = vpop.f32.mrf.mxu0
    %v435 = vpop.f32.mrf.mxu0
    %v436 = vpop.f32.mrf.mxu0
    %437 = vdwg.mxu0
    %v439 = vsel %vm366, %v390, 0
    %v442 = vsel %vm394, %v270, 0
    %444 = vmatprep.subr.bf16.mxu0 0
    %445 = vmatpush1.bf16.msra.mxu0 0
    %446 = vmatprep.subr.bf16.mxu0 0
    %447 = vmatpush1.bf16.msra.mxu0 0
    %448 = vmatprep.subr.bf16.mxu0 0
    %449 = vmatpush1.bf16.msra.mxu0 0
    %450 = vmatprep.subr.bf16.mxu0 0
    %451 = vmatpush1.bf16.msra.mxu0 0
    %452 = vmatprep.subr.bf16.mxu0 0
    %453 = vmatpush1.bf16.msra.mxu0 0
    %454 = vmatprep.subr.bf16.mxu0 0
    %455 = vmatpush1.bf16.msra.mxu0 0
    %456 = vmatprep.subr.bf16.mxu0 0
    %457 = vmatpush1.bf16.msra.mxu0 0
    %458 = vmatprep.subr.bf16.mxu0 0
    %459 = vmatpush1.bf16.msra.mxu0 %v442
    %460 = vmatprep.subr.bf16.mxu0 0
    %461 = vmatpush2.bf16.msra.mxu0 0
    %462 = vmatprep.subr.bf16.mxu0 0
    %463 = vmatpush2.bf16.msra.mxu0 0
    %464 = vmatprep.subr.bf16.mxu0 0
    %465 = vmatpush2.bf16.msra.mxu0 0
    %466 = vmatprep.subr.bf16.mxu0 0
    %467 = vmatpush2.bf16.msra.mxu0 0
    %468 = vmatprep.subr.bf16.mxu0 0
    %469 = vmatpush2.bf16.msra.mxu0 0
    %470 = vmatprep.subr.bf16.mxu0 0
    %471 = vmatpush2.bf16.msra.mxu0 0
    %472 = vmatprep.subr.bf16.mxu0 0
    %473 = vmatpush2.bf16.msra.mxu0 0
    %474 = vmatprep.subr.bf16.mxu0 0
    %475 = vmatpush2.bf16.msra.mxu0 0
    %476 = vmatprep.mubr.bf16.mxu0 0
    %477 = vmatmul.mubr.bf16.gmra.mxu0 %v439
    %v478 = vpop.f32.mrf.mxu0
    %v479 = vadd.f32 0.0, %v478
    %v480 = vpop.f32.mrf.mxu0
    %v481 = vpop.f32.mrf.mxu0
    %v482 = vpop.f32.mrf.mxu0
    %483 = vdwg.mxu0
    %485 = vrot.lane.b32.xlu0 %v265, 112
    %v486 = vpop.permute.xlu0 %485
    %488 = vrot.lane.b32.xlu0 %v267, 112
    %v489 = vpop.permute.xlu0 %488
    %v491 = vsel %vm271, %v486, 0
    %v494 = vsel %vm271, %v489, 0
    %496 = vmatprep.subr.bf16.mxu0 0
    %497 = vmatpush1.bf16.xpose.msra.mxu0 0
    %498 = vmatprep.subr.bf16.mxu0 0
    %499 = vmatpush1.bf16.xpose.msra.mxu0 0
    %500 = vmatprep.subr.bf16.mxu0 0
    %501 = vmatpush1.bf16.xpose.msra.mxu0 0
    %502 = vmatprep.subr.bf16.mxu0 0
    %503 = vmatpush1.bf16.xpose.msra.mxu0 0
    %504 = vmatprep.subr.bf16.mxu0 0
    %505 = vmatpush1.bf16.xpose.msra.mxu0 0
    %506 = vmatprep.subr.bf16.mxu0 0
    %507 = vmatpush1.bf16.xpose.msra.mxu0 0
    %508 = vmatprep.subr.bf16.mxu0 0
    %509 = vmatpush1.bf16.xpose.msra.mxu0 0
    %510 = vmatprep.subr.bf16.mxu0 0
    %511 = vmatpush1.bf16.xpose.msra.mxu0 %v494
    %512 = vmatprep.subr.bf16.mxu0 0
    %513 = vmatpush2.bf16.xpose.msra.mxu0 0
    %514 = vmatprep.subr.bf16.mxu0 0
    %515 = vmatpush2.bf16.xpose.msra.mxu0 0
    %516 = vmatprep.subr.bf16.mxu0 0
    %517 = vmatpush2.bf16.xpose.msra.mxu0 0
    %518 = vmatprep.subr.bf16.mxu0 0
    %519 = vmatpush2.bf16.xpose.msra.mxu0 0
    %520 = vmatprep.subr.bf16.mxu0 0
    %521 = vmatpush2.bf16.xpose.msra.mxu0 0
    %522 = vmatprep.subr.bf16.mxu0 0
    %523 = vmatpush2.bf16.xpose.msra.mxu0 0
    %524 = vmatprep.subr.bf16.mxu0 0
    %525 = vmatpush2.bf16.xpose.msra.mxu0 0
    %526 = vmatprep.subr.bf16.mxu0 0
    %527 = vmatpush2.bf16.xpose.msra.mxu0 0
    %528 = vmatprep.mubr.bf16.mxu0 0
    %529 = vmatmul.mubr.bf16.gmra.mxu0 %v491
    %v530 = vpop.f32.mrf.mxu0
    %v531 = vadd.f32 0.0, %v530
    %v532 = vpop.f32.mrf.mxu0
    %v533 = vpop.f32.mrf.mxu0
    %v534 = vpop.f32.mrf.mxu0
    %535 = vdwg.mxu0
    %537 = vrot.lane.b32.xlu0 %v266, 112
    %v538 = vpop.permute.xlu0 %537
    %540 = vrot.lane.b32.xlu0 %v268, 112
    %v541 = vpop.permute.xlu0 %540
    %v543 = vsel %vm271, %v538, 0
    %v546 = vsel %vm271, %v541, 0
    %548 = vmatprep.subr.bf16.mxu0 0
    %549 = vmatpush1.bf16.xpose.msra.mxu0 0
    %550 = vmatprep.subr.bf16.mxu0 0
    %551 = vmatpush1.bf16.xpose.msra.mxu0 0
    %552 = vmatprep.subr.bf16.mxu0 0
    %553 = vmatpush1.bf16.xpose.msra.mxu0 0
    %554 = vmatprep.subr.bf16.mxu0 0
    %555 = vmatpush1.bf16.xpose.msra.mxu0 0
    %556 = vmatprep.subr.bf16.mxu0 0
    %557 = vmatpush1.bf16.xpose.msra.mxu0 0
    %558 = vmatprep.subr.bf16.mxu0 0
    %559 = vmatpush1.bf16.xpose.msra.mxu0 0
    %560 = vmatprep.subr.bf16.mxu0 0
    %561 = vmatpush1.bf16.xpose.msra.mxu0 0
    %562 = vmatprep.subr.bf16.mxu0 0
    %563 = vmatpush1.bf16.xpose.msra.mxu0 %v546
    %564 = vmatprep.subr.bf16.mxu0 0
    %565 = vmatpush2.bf16.xpose.msra.mxu0 0
    %566 = vmatprep.subr.bf16.mxu0 0
    %567 = vmatpush2.bf16.xpose.msra.mxu0 0
    %568 = vmatprep.subr.bf16.mxu0 0
    %569 = vmatpush2.bf16.xpose.msra.mxu0 0
    %570 = vmatprep.subr.bf16.mxu0 0
    %571 = vmatpush2.bf16.xpose.msra.mxu0 0
    %572 = vmatprep.subr.bf16.mxu0 0
    %573 = vmatpush2.bf16.xpose.msra.mxu0 0
    %574 = vmatprep.subr.bf16.mxu0 0
    %575 = vmatpush2.bf16.xpose.msra.mxu0 0
    %576 = vmatprep.subr.bf16.mxu0 0
    %577 = vmatpush2.bf16.xpose.msra.mxu0 0
    %578 = vmatprep.subr.bf16.mxu0 0
    %579 = vmatpush2.bf16.xpose.msra.mxu0 0
    %580 = vmatprep.mubr.bf16.mxu0 0
    %581 = vmatmul.mubr.bf16.gmra.mxu0 %v543
    %v582 = vpop.f32.mrf.mxu0
    %v583 = vadd.f32 0.0, %v582
    %v584 = vpop.f32.mrf.mxu0
    %v585 = vpop.f32.mrf.mxu0
    %v586 = vpop.f32.mrf.mxu0
    %587 = vdwg.mxu0
    %v588 = vmul.f32 %v531, 0.25
    %v589 = vmul.f32 %v583, 0.25
    %v590 = vsel %vm366, %v588, -inf
    %591 = vmax.xlane.f32.xlu0 %v590
    %v592 = vpop.xlane.xlu0 %591
    %v593 = vsel %vm366, %v589, -inf
    %594 = vmax.xlane.f32.xlu0 %v593
    %v595 = vpop.xlane.xlu0 %594
    %v596 = vsub.f32 %v588, %v592
    %v597 = vsub.f32 %v589, %v595
    %v598 = vmul.f32 %v596, 1.442695
    %v599 = vpow.pop %v598
    %v600 = vmul.f32 %v597, 1.442695
    %v601 = vpow.pop %v600
    %v602 = vsel %vm366, %v599, 0.0
    %603 = vadd.xlane.f32.xlu0 %v602
    %v604 = vpop.xlane.xlu0 %603
    %v605 = vsel %vm366, %v601, 0.0
    %606 = vadd.xlane.f32.xlu0 %v605
    %v607 = vpop.xlane.xlu0 %606
    %v608 = vrcp.pop %v604
    %v609 = vrcp.pop %v607
    %v610 = vmul.f32 %v599, %v608
    %v611 = vmul.f32 %v601, %v609
    %v612 = vpack.c.bf16 %v610, %v610
    %v613 = vpack.c.bf16 %v611, %v611
    %615 = vrot.lane.b32.xlu0 %v269, 96
    %v616 = vpop.permute.xlu0 %615
    %v618 = vsel %vm366, %v612, 0
    %v621 = vsel %vm394, %v616, 0
    %623 = vmatprep.subr.bf16.mxu0 0
    %624 = vmatpush1.bf16.msra.mxu0 0
    %625 = vmatprep.subr.bf16.mxu0 0
    %626 = vmatpush1.bf16.msra.mxu0 0
    %627 = vmatprep.subr.bf16.mxu0 0
    %628 = vmatpush1.bf16.msra.mxu0 0
    %629 = vmatprep.subr.bf16.mxu0 0
    %630 = vmatpush1.bf16.msra.mxu0 0
    %631 = vmatprep.subr.bf16.mxu0 0
    %632 = vmatpush1.bf16.msra.mxu0 0
    %633 = vmatprep.subr.bf16.mxu0 0
    %634 = vmatpush1.bf16.msra.mxu0 0
    %635 = vmatprep.subr.bf16.mxu0 0
    %636 = vmatpush1.bf16.msra.mxu0 0
    %637 = vmatprep.subr.bf16.mxu0 0
    %638 = vmatpush1.bf16.msra.mxu0 %v621
    %639 = vmatprep.subr.bf16.mxu0 0
    %640 = vmatpush2.bf16.msra.mxu0 0
    %641 = vmatprep.subr.bf16.mxu0 0
    %642 = vmatpush2.bf16.msra.mxu0 0
    %643 = vmatprep.subr.bf16.mxu0 0
    %644 = vmatpush2.bf16.msra.mxu0 0
    %645 = vmatprep.subr.bf16.mxu0 0
    %646 = vmatpush2.bf16.msra.mxu0 0
    %647 = vmatprep.subr.bf16.mxu0 0
    %648 = vmatpush2.bf16.msra.mxu0 0
    %649 = vmatprep.subr.bf16.mxu0 0
    %650 = vmatpush2.bf16.msra.mxu0 0
    %651 = vmatprep.subr.bf16.mxu0 0
    %652 = vmatpush2.bf16.msra.mxu0 0
    %653 = vmatprep.subr.bf16.mxu0 0
    %654 = vmatpush2.bf16.msra.mxu0 0
    %655 = vmatprep.mubr.bf16.mxu0 0
    %656 = vmatmul.mubr.bf16.gmra.mxu0 %v618
    %v657 = vpop.f32.mrf.mxu0
    %v658 = vadd.f32 0.0, %v657
    %v659 = vpop.f32.mrf.mxu0
    %v660 = vpop.f32.mrf.mxu0
    %v661 = vpop.f32.mrf.mxu0
    %662 = vdwg.mxu0
    %664 = vrot.lane.b32.xlu0 %v270, 96
    %v665 = vpop.permute.xlu0 %664
    %v667 = vsel %vm366, %v613, 0
    %v670 = vsel %vm394, %v665, 0
    %672 = vmatprep.subr.bf16.mxu0 0
    %673 = vmatpush1.bf16.msra.mxu0 0
    %674 = vmatprep.subr.bf16.mxu0 0
    %675 = vmatpush1.bf16.msra.mxu0 0
    %676 = vmatprep.subr.bf16.mxu0 0
    %677 = vmatpush1.bf16.msra.mxu0 0
    %678 = vmatprep.subr.bf16.mxu0 0
    %679 = vmatpush1.bf16.msra.mxu0 0
    %680 = vmatprep.subr.bf16.mxu0 0
    %681 = vmatpush1.bf16.msra.mxu0 0
    %682 = vmatprep.subr.bf16.mxu0 0
    %683 = vmatpush1.bf16.msra.mxu0 0
    %684 = vmatprep.subr.bf16.mxu0 0
    %685 = vmatpush1.bf16.msra.mxu0 0
    %686 = vmatprep.subr.bf16.mxu0 0
    %687 = vmatpush1.bf16.msra.mxu0 %v670
    %688 = vmatprep.subr.bf16.mxu0 0
    %689 = vmatpush2.bf16.msra.mxu0 0
    %690 = vmatprep.subr.bf16.mxu0 0
    %691 = vmatpush2.bf16.msra.mxu0 0
    %692 = vmatprep.subr.bf16.mxu0 0
    %693 = vmatpush2.bf16.msra.mxu0 0
    %694 = vmatprep.subr.bf16.mxu0 0
    %695 = vmatpush2.bf16.msra.mxu0 0
    %696 = vmatprep.subr.bf16.mxu0 0
    %697 = vmatpush2.bf16.msra.mxu0 0
    %698 = vmatprep.subr.bf16.mxu0 0
    %699 = vmatpush2.bf16.msra.mxu0 0
    %700 = vmatprep.subr.bf16.mxu0 0
    %701 = vmatpush2.bf16.msra.mxu0 0
    %702 = vmatprep.subr.bf16.mxu0 0
    %703 = vmatpush2.bf16.msra.mxu0 0
    %704 = vmatprep.mubr.bf16.mxu0 0
    %705 = vmatmul.mubr.bf16.gmra.mxu0 %v667
    %v706 = vpop.f32.mrf.mxu0
    %v707 = vadd.f32 0.0, %v706
    %v708 = vpop.f32.mrf.mxu0
    %v709 = vpop.f32.mrf.mxu0
    %v710 = vpop.f32.mrf.mxu0
    %711 = vdwg.mxu0
    %714 = vrot.lane.b32.xlu0 %v658, 32
    %v715 = vpop.permute.xlu0 %714
    %716 = vrot.lane.b32.xlu0 %v707, 32
    %v717 = vpop.permute.xlu0 %716
    %v720 = vsel %vm106, %v433, %v715
    %v721 = vsel %vm106, %v479, %v717
    %v722 = vpack.c.bf16 %v721, %v720
    %v723 = vld [vmem:[%s4] sm:$0xf]
    %v724 = vld [vmem:[%s4 + $0x4] sm:$0xf]
    %v725 = vld [vmem:[%s4 + $0x8] sm:$0xf]
    %v726 = vld [vmem:[%s4 + $0xc] sm:$0xf]
    %v727 = vld [vmem:[%s4 + $0x10] sm:$0xf]
    %v728 = vld [vmem:[%s4 + $0x14] sm:$0xf]
    %v729 = vld [vmem:[%s4 + $0x18] sm:$0xf]
    %v730 = vld [vmem:[%s4 + $0x1c] sm:$0xf]
    %v739 = vunpack.c.l.b16 %v723
    %v740 = vunpack.c.l.b16 %v724
    %v741 = vunpack.c.l.b16 %v725
    %v742 = vunpack.c.l.b16 %v726
    %v743 = vunpack.c.l.b16 %v727
    %v744 = vunpack.c.l.b16 %v728
    %v745 = vunpack.c.l.b16 %v729
    %v746 = vunpack.c.l.b16 %v730
    %v747 = vpack.c.b16 %v740, %v739
    %v748 = vpack.c.b16 %v742, %v741
    %v749 = vpack.c.b16 %v744, %v743
    %v750 = vpack.c.b16 %v746, %v745
    %vm755 = vcmask 523264
    %v757 = vsel %vm755, %v722, 0
    %759 = vmatprep.subr.bf16.mxu0 0
    %760 = vmatpush1.bf16.msra.mxu0 0
    %761 = vmatprep.subr.bf16.mxu0 0
    %762 = vmatpush1.bf16.msra.mxu0 0
    %763 = vmatprep.subr.bf16.mxu0 0
    %764 = vmatpush1.bf16.msra.mxu0 0
    %765 = vmatprep.subr.bf16.mxu0 0
    %766 = vmatpush1.bf16.msra.mxu0 0
    %767 = vmatprep.subr.bf16.mxu0 0
    %768 = vmatpush1.bf16.msra.mxu0 %v750
    %769 = vmatprep.subr.bf16.mxu0 0
    %770 = vmatpush1.bf16.msra.mxu0 %v749
    %771 = vmatprep.subr.bf16.mxu0 0
    %772 = vmatpush1.bf16.msra.mxu0 %v748
    %773 = vmatprep.subr.bf16.mxu0 0
    %774 = vmatpush1.bf16.msra.mxu0 %v747
    %775 = vmatprep.subr.bf16.mxu0 0
    %776 = vmatpush2.bf16.msra.mxu0 0
    %777 = vmatprep.subr.bf16.mxu0 0
    %778 = vmatpush2.bf16.msra.mxu0 0
    %779 = vmatprep.subr.bf16.mxu0 0
    %780 = vmatpush2.bf16.msra.mxu0 0
    %781 = vmatprep.subr.bf16.mxu0 0
    %782 = vmatpush2.bf16.msra.mxu0 0
    %783 = vmatprep.subr.bf16.mxu0 0
    %784 = vmatpush2.bf16.msra.mxu0 0
    %785 = vmatprep.subr.bf16.mxu0 0
    %786 = vmatpush2.bf16.msra.mxu0 0
    %787 = vmatprep.subr.bf16.mxu0 0
    %788 = vmatpush2.bf16.msra.mxu0 0
    %789 = vmatprep.subr.bf16.mxu0 0
    %790 = vmatpush2.bf16.msra.mxu0 0
    %791 = vmatprep.mubr.bf16.mxu0 0
    %792 = vmatmul.mubr.bf16.gmra.mxu0 %v757
    %v793 = vpop.f32.mrf.mxu0
    %v794 = vadd.f32 0.0, %v793
    %v795 = vpop.f32.mrf.mxu0
    %v796 = vpop.f32.mrf.mxu0
    %v797 = vadd.f32 0.0, %v796
    %v798 = vpop.f32.mrf.mxu0
    %799 = vdwg.mxu0
    %v800 = vadd.f32 %v87, %v794
    %v801 = vadd.f32 %v88, %v797
    %v802 = vld [vmem:[%s9] sm:$0x1]
    %v803 = vld [vmem:[%s10] sm:$0x1]
    %v804 = vsel %vm106, %v800, 0.0
    %805 = vadd.xlane.f32.xlu0 %v804
    %v806 = vpop.xlane.xlu0 %805
    %v807 = vsel %vm106, %v801, 0.0
    %808 = vadd.xlane.f32.xlu0 %v807
    %v809 = vpop.xlane.xlu0 %808
    %v810 = vrcp.pop 32.0
    %v811 = vmul.f32 %v806, %v810
    %v812 = vmul.f32 %v809, %v810
    %v813 = vsub.f32 %v800, %v811
    %v814 = vsub.f32 %v801, %v812
    %v815 = vmul.f32 %v813, %v813
    %v816 = vmul.f32 %v814, %v814
    %v817 = vsel %vm106, %v815, 0.0
    %818 = vadd.xlane.f32.xlu0 %v817
    %v819 = vpop.xlane.xlu0 %818
    %v820 = vsel %vm106, %v816, 0.0
    %821 = vadd.xlane.f32.xlu0 %v820
    %v822 = vpop.xlane.xlu0 %821
    %v823 = vmul.f32 %v819, %v810
    %v824 = vmul.f32 %v822, %v810
    %v825 = vadd.f32 %v823, 1e-05
    %v826 = vadd.f32 %v824, 1e-05
    %v827 = vrsqrt.pop %v825
    %v828 = vrsqrt.pop %v826
    %v829 = vmul.f32 %v813, %v827
    %v830 = vmul.f32 %v814, %v828
    %v832 = vlaneseq
    %v833 = vshrl.u32 %v832, 7
    %v834 = vsub.s32 0, %v833
    %v835 = vrot.slane %v802, %v834
    %v837 = vmul.f32 %v829, %v835
    %v838 = vmul.f32 %v830, %v835
    %v840 = vlaneseq
    %v841 = vshrl.u32 %v840, 7
    %v842 = vsub.s32 0, %v841
    %v843 = vrot.slane %v803, %v842
    %v845 = vadd.f32 %v837, %v843
    %v846 = vadd.f32 %v838, %v843
    %v847 = vpack.c.bf16 %v846, %v845
    %v848 = vld [vmem:[#allocation7] sm:$0xf]
    %v849 = vld [vmem:[#allocation7 + $0x4] sm:$0xf]
    %v850 = vld [vmem:[#allocation7 + $0x8] sm:$0xf]
    %v851 = vld [vmem:[#allocation7 + $0xc] sm:$0xf]
    %v852 = vld [vmem:[%s8] sm:$0x1]
    %v854 = vlaneseq
    %v855 = vshrl.u32 %v854, 7
    %v856 = vsub.s32 0, %v855
    %v857 = vrot.slane %v852, %v856
    %v863 = vunpack.c.l.b16 %v848
    %v864 = vunpack.c.l.b16 %v849
    %v865 = vunpack.c.l.b16 %v850
    %v866 = vunpack.c.l.b16 %v851
    %v867 = vpack.c.b16 %v864, %v863
    %v868 = vpack.c.b16 %v866, %v865
    %v872 = vsel %vm106, %v847, 0
    %874 = vmatprep.subr.bf16.mxu0 0
    %875 = vmatpush1.bf16.msra.mxu0 0
    %876 = vmatprep.subr.bf16.mxu0 0
    %877 = vmatpush1.bf16.msra.mxu0 0
    %878 = vmatprep.subr.bf16.mxu0 0
    %879 = vmatpush1.bf16.msra.mxu0 0
    %880 = vmatprep.subr.bf16.mxu0 0
    %881 = vmatpush1.bf16.msra.mxu0 0
    %882 = vmatprep.subr.bf16.mxu0 0
    %883 = vmatpush1.bf16.msra.mxu0 0
    %884 = vmatprep.subr.bf16.mxu0 0
    %885 = vmatpush1.bf16.msra.mxu0 0
    %886 = vmatprep.subr.bf16.mxu0 0
    %887 = vmatpush1.bf16.msra.mxu0 %v868
    %888 = vmatprep.subr.bf16.mxu0 0
    %889 = vmatpush1.bf16.msra.mxu0 %v867
    %890 = vmatprep.subr.bf16.mxu0 0
    %891 = vmatpush2.bf16.msra.mxu0 0
    %892 = vmatprep.subr.bf16.mxu0 0
    %893 = vmatpush2.bf16.msra.mxu0 0
    %894 = vmatprep.subr.bf16.mxu0 0
    %895 = vmatpush2.bf16.msra.mxu0 0
    %896 = vmatprep.subr.bf16.mxu0 0
    %897 = vmatpush2.bf16.msra.mxu0 0
    %898 = vmatprep.subr.bf16.mxu0 0
    %899 = vmatpush2.bf16.msra.mxu0 0
    %900 = vmatprep.subr.bf16.mxu0 0
    %901 = vmatpush2.bf16.msra.mxu0 0
    %902 = vmatprep.subr.bf16.mxu0 0
    %903 = vmatpush2.bf16.msra.mxu0 0
    %904 = vmatprep.subr.bf16.mxu0 0
    %905 = vmatpush2.bf16.msra.mxu0 0
    %906 = vmatprep.mubr.bf16.mxu0 0
    %907 = vmatmul.mubr.bf16.gmra.mxu0 %v872
    %v908 = vpop.f32.mrf.mxu0
    %v909 = vadd.f32 %v857, %v908
    %v910 = vpop.f32.mrf.mxu0
    %v911 = vpop.f32.mrf.mxu0
    %v912 = vadd.f32 %v857, %v911
    %v913 = vpop.f32.mrf.mxu0
    %914 = vdwg.mxu0
    %vm915 = vcmp.gt.f32.partialorder %v909, 0.0
    %vm916 = vcmp.gt.f32.partialorder %v912, 0.0
    %v917 = vmin.f32 %v909, 0.0
    %v918 = vmin.f32 %v912, 0.0
    %v919 = vmul.f32 %v917, 1.442695
    %v920 = vpow.pop %v919
    %v921 = vmul.f32 %v918, 1.442695
    %v922 = vpow.pop %v921
    %v923 = vsub.f32 %v920, 1.0
    %v924 = vsub.f32 %v922, 1.0
    %v925 = vsel %vm915, %v909, %v923
    %v926 = vsel %vm916, %v912, %v924
    %v927 = vpack.c.bf16 %v926, %v925
    %v928 = vld [vmem:[#allocation5] sm:$0xf]
    %v929 = vld [vmem:[#allocation5 + $0x4] sm:$0xf]
    %v930 = vld [vmem:[#allocation5 + $0x8] sm:$0xf]
    %v931 = vld [vmem:[#allocation5 + $0xc] sm:$0xf]
    %v932 = vld [vmem:[%s6] sm:$0x1]
    %v934 = vlaneseq
    %v935 = vshrl.u32 %v934, 7
    %v936 = vsub.s32 0, %v935
    %v937 = vrot.slane %v932, %v936
    %v943 = vunpack.c.l.b16 %v928
    %v944 = vunpack.c.l.b16 %v929
    %v945 = vunpack.c.l.b16 %v930
    %v946 = vunpack.c.l.b16 %v931
    %v947 = vpack.c.b16 %v944, %v943
    %v948 = vpack.c.b16 %v946, %v945
    %v952 = vsel %vm106, %v927, 0
    %954 = vmatprep.subr.bf16.mxu0 0
    %955 = vmatpush1.bf16.msra.mxu0 0
    %956 = vmatprep.subr.bf16.mxu0 0
    %957 = vmatpush1.bf16.msra.mxu0 0
    %958 = vmatprep.subr.bf16.mxu0 0
    %959 = vmatpush1.bf16.msra.mxu0 0
    %960 = vmatprep.subr.bf16.mxu0 0
    %961 = vmatpush1.bf16.msra.mxu0 0
    %962 = vmatprep.subr.bf16.mxu0 0
    %963 = vmatpush1.bf16.msra.mxu0 0
    %964 = vmatprep.subr.bf16.mxu0 0
    %965 = vmatpush1.bf16.msra.mxu0 0
    %966 = vmatprep.subr.bf16.mxu0 0
    %967 = vmatpush1.bf16.msra.mxu0 %v948
    %968 = vmatprep.subr.bf16.mxu0 0
    %969 = vmatpush1.bf16.msra.mxu0 %v947
    %970 = vmatprep.subr.bf16.mxu0 0
    %971 = vmatpush2.bf16.msra.mxu0 0
    %972 = vmatprep.subr.bf16.mxu0 0
    %973 = vmatpush2.bf16.msra.mxu0 0
    %974 = vmatprep.subr.bf16.mxu0 0
    %975 = vmatpush2.bf16.msra.mxu0 0
    %976 = vmatprep.subr.bf16.mxu0 0
    %977 = vmatpush2.bf16.msra.mxu0 0
    %978 = vmatprep.subr.bf16.mxu0 0
    %979 = vmatpush2.bf16.msra.mxu0 0
    %980 = vmatprep.subr.bf16.mxu0 0
    %981 = vmatpush2.bf16.msra.mxu0 0
    %982 = vmatprep.subr.bf16.mxu0 0
    %983 = vmatpush2.bf16.msra.mxu0 0
    %984 = vmatprep.subr.bf16.mxu0 0
    %985 = vmatpush2.bf16.msra.mxu0 0
    %986 = vmatprep.mubr.bf16.mxu0 0
    %987 = vmatmul.mubr.bf16.gmra.mxu0 %v952
    %v988 = vpop.f32.mrf.mxu0
    %v989 = vadd.f32 %v937, %v988
    %v990 = vpop.f32.mrf.mxu0
    %v991 = vpop.f32.mrf.mxu0
    %v992 = vadd.f32 %v937, %v991
    %v993 = vpop.f32.mrf.mxu0
    %994 = vdwg.mxu0
    %v995 = vadd.f32 %v845, %v989
    %v996 = vadd.f32 %v846, %v992
    %v997 = vld [vmem:[%s11] sm:$0x1]
    %v998 = vld [vmem:[%s12] sm:$0x1]
    %v999 = vsel %vm106, %v995, 0.0
    %1000 = vadd.xlane.f32.xlu0 %v999
    %v1001 = vpop.xlane.xlu0 %1000
    %v1002 = vsel %vm106, %v996, 0.0
    %1003 = vadd.xlane.f32.xlu0 %v1002
    %v1004 = vpop.xlane.xlu0 %1003
    %v1005 = vmul.f32 %v1001, %v810
    %v1006 = vmul.f32 %v1004, %v810
    %v1007 = vsub.f32 %v995, %v1005
    %v1008 = vsub.f32 %v996, %v1006
    %v1009 = vmul.f32 %v1007, %v1007
    %v1010 = vmul.f32 %v1008, %v1008
    %v1011 = vsel %vm106, %v1009, 0.0
    %1012 = vadd.xlane.f32.xlu0 %v1011
    %v1013 = vpop.xlane.xlu0 %1012
    %v1014 = vsel %vm106, %v1010, 0.0
    %1015 = vadd.xlane.f32.xlu0 %v1014
    %v1016 = vpop.xlane.xlu0 %1015
    %v1017 = vmul.f32 %v1013, %v810
    %v1018 = vmul.f32 %v1016, %v810
    %v1019 = vadd.f32 %v1017, 1e-05
    %v1020 = vadd.f32 %v1018, 1e-05
    %v1021 = vrsqrt.pop %v1019
    %v1022 = vrsqrt.pop %v1020
    %v1023 = vmul.f32 %v1007, %v1021
    %v1024 = vmul.f32 %v1008, %v1022
    %v1026 = vlaneseq
    %v1027 = vshrl.u32 %v1026, 7
    %v1028 = vsub.s32 0, %v1027
    %v1029 = vrot.slane %v997, %v1028
    %v1031 = vmul.f32 %v1023, %v1029
    %v1032 = vmul.f32 %v1024, %v1029
    %v1034 = vlaneseq
    %v1035 = vshrl.u32 %v1034, 7
    %v1036 = vsub.s32 0, %v1035
    %v1037 = vrot.slane %v998, %v1036
    %v1039 = vadd.f32 %v1031, %v1037
    %v1040 = vadd.f32 %v1032, %v1037
    %1041 = vst.msk [vmem:[#allocation8] sm:$0xff] %vm106, %v1039
    %1042 = vst.msk [vmem:[#allocation8 + $0x8] sm:$0xff] %vm106, %v1040
    // Predicated region
    $region66: #{tpu_custom_call.1} parent=1 // pred_check
      _
    $region67: #{tpu_custom_call.1} parent=1 // pred_check_branch
      %1044 = sbr.rel (0) target = $region69
    $region68: #{tpu_custom_call.1} parent=1 // pred_region
      %s1046 = ssub.s32 256, 256
      %1047 = vsyncadd [#allocation4], %s1046
      %s1048 = sshll.u32 [#allocation8], 4
      %s1049 = int_to_ptr.vmem [resolvable:$true] %s1048
      %1054 = dma.vmem_to_hbm [thread:$0]  %s1049, 256, %s13, [#allocation4], 128, 128, 8
    $region69: #{tpu_custom_call.1} parent=1 // pred_fallthru
      _
    // Predicated region
    $region70: #{tpu_custom_call.1} parent=1 // pred_check
      _
    $region71: #{tpu_custom_call.1} parent=1 // pred_check_branch
      %1056 = sbr.rel (0) target = $region73
    $region72: #{tpu_custom_call.1} parent=1 // pred_region
      %1057 = dma.done [#allocation4], 256
    $region73: #{tpu_custom_call.1} parent=1 // pred_fallthru
      _
    %1058 = vsyncpa [#allocation3], 1
    %1059 = vsyncpa [#allocation6], 1
    %1060 = vsyncpa [#allocation4], 1

</llo_original>
